<compile_context>
chip_gen: v7x
topology: tpu7x:2x2x1
jax: 0.10.0
libtpu: 0.0.40
codegen_flags: <defaults>
</compile_context>

<pallas_src>
import math
import numpy as np
import jax
import jax.numpy as jnp
from jax.experimental import pallas as pl
from jax.experimental.pallas import tpu as pltpu  # noqa: F401  (TPU backend)

D_MODEL = 4
N_HEAD = 4
HEAD_DIM = D_MODEL // N_HEAD  # = 1
D_FF = 3
LN_EPS = 1e-5

# ---- packed parameter slab layout (rows x 16 cols, f32) ----
# rows  0: 4  -> wqkv^T (4,12)
# rows  4: 8  -> wo^T   (4, 4)
# rows  8:12  -> w1^T   (4, 3)
# rows 12:15  -> w2^T   (3, 4)
# row  15     -> bqkv   (12,)
# row  16     -> bo     (4,)
# row  17     -> b1     (3,)
# row  18     -> b2     (4,)
# row  19     -> g1     (4,)
# row  20     -> be1    (4,)
# row  21     -> g2     (4,)
# row  22     -> be2    (4,)
# row  23     -> padding (sublane alignment)
SLAB_ROWS = 24
SLAB_COLS = 16


def _layernorm(z, gamma, beta, eps=LN_EPS):
    mu = jnp.mean(z, axis=-1, keepdims=True)
    var = jnp.mean((z - mu) ** 2, axis=-1, keepdims=True)
    return (z - mu) * jax.lax.rsqrt(var + eps) * gamma + beta


def _gelu_exact(z):
    # PyTorch F.gelu default (erf form)
    return 0.5 * z * (1.0 + jax.lax.erf(z * (1.0 / math.sqrt(2.0))))


def encoder_layer_kernel(x_ref, p_ref, out_ref):
    P = p_ref[...]                       # (24, 16) packed parameter slab

    wqkv_t = P[0:4, 0:12]                # (D, 3D)   pre-transposed
    wo_t   = P[4:8, 0:4]                 # (D, D)
    w1_t   = P[8:12, 0:3]                # (D, D_FF)
    w2_t   = P[12:15, 0:4]               # (D_FF, D)
    bqkv   = P[15:16, 0:12]              # (1, 3D)   kept 2-D for broadcast
    bo     = P[16:17, 0:4]
    b1     = P[17:18, 0:3]
    b2     = P[18:19, 0:4]
    g1     = P[19:20, 0:4]
    be1    = P[20:21, 0:4]
    g2     = P[21:22, 0:4]
    be2    = P[22:23, 0:4]

    scale = 1.0 / math.sqrt(HEAD_DIM)
    B = x_ref.shape[0]

    # Tiny trace-time-unrolled loop over batch (B=2); attention is per-batch.
    for b in range(B):
        xb = x_ref[b]                                            # (S, D)

        # ---- QKV projection (weights pre-transposed on host) ----
        qkv = jnp.dot(xb, wqkv_t,
                      preferred_element_type=jnp.float32) + bqkv  # (S, 3D)
        q = qkv[:, 0:D_MODEL] * scale
        k = qkv[:, D_MODEL:2 * D_MODEL]
        v = qkv[:, 2 * D_MODEL:3 * D_MODEL]

        # ---- attention, head_dim == 1: pure VPU broadcast math ----
        # Put sequence in lanes: (H, S) per head.
        qT = q.T                                                  # (H, S)
        kT = k.T
        vT = v.T
        scores = qT[:, :, None] * kT[:, None, :]                  # (H, S, S)
        scores = scores - jnp.max(scores, axis=-1, keepdims=True)
        pexp = jnp.exp(scores)
        attn = pexp / jnp.sum(pexp, axis=-1, keepdims=True)       # softmax(keys)
        ctxT = jnp.sum(attn * vT[:, None, :], axis=-1)            # (H, S)
        ctx = ctxT.T                                              # (S, D)

        sa = jnp.dot(ctx, wo_t,
                     preferred_element_type=jnp.float32) + bo

        # ---- residual + LayerNorm 1 (post-norm) ----
        h1 = _layernorm(xb + sa, g1, be1)

        # ---- feed-forward: Linear(4->3) -> GELU -> Linear(3->4) ----
        f = jnp.dot(h1, w1_t, preferred_element_type=jnp.float32) + b1
        f = _gelu_exact(f)
        f = jnp.dot(f, w2_t, preferred_element_type=jnp.float32) + b2

        # ---- residual + LayerNorm 2 ----
        out_ref[b] = _layernorm(h1 + f, g2, be2)


def pack_params(params):
    """Pack all weights (pre-transposed) + biases/LN params into one slab."""
    def mat(m):
        m = jnp.asarray(m, jnp.float32)
        return jnp.pad(m, ((0, 0), (0, SLAB_COLS - m.shape[1])))

    def row(v):
        v = jnp.reshape(jnp.asarray(v, jnp.float32), (1, -1))
        return jnp.pad(v, ((0, 0), (0, SLAB_COLS - v.shape[1])))

    parts = [
        mat(params['wqkv'].T),   # rows 0:4
        mat(params['wo'].T),     # rows 4:8
        mat(params['w1'].T),     # rows 8:12
        mat(params['w2'].T),     # rows 12:15
        row(params['bqkv']),     # row 15
        row(params['bo']),       # row 16
        row(params['b1']),       # row 17
        row(params['b2']),       # row 18
        row(params['g1']),       # row 19
        row(params['be1']),      # row 20
        row(params['g2']),       # row 21
        row(params['be2']),      # row 22
    ]
    slab = jnp.concatenate(parts, axis=0)                      # (23, 16)
    slab = jnp.pad(slab, ((0, SLAB_ROWS - slab.shape[0]), (0, 0)))
    return slab


def transformer_encoder_pallas(x, params):
    B, S, D = x.shape
    assert D == D_MODEL
    slab = pack_params(params)
    # Single invocation, no grid: whole (B,S,D) tile + one packed param slab
    # land in VMEM once; no per-grid-step pipeline overhead.
    return pl.pallas_call(
        encoder_layer_kernel,
        out_shape=jax.ShapeDtypeStruct((B, S, D), x.dtype),
    )(x, slab)


def transformer_encoder_ref(x, params):
    """Pure-JAX reference (same math, no Pallas) for sanity checking."""
    wqkv, bqkv = params['wqkv'], params['bqkv'][0]
    wo, bo = params['wo'], params['bo'][0]
    w1, b1 = params['w1'], params['b1'][0]
    w2, b2 = params['w2'], params['b2'][0]
    g1, be1 = params['g1'][0], params['be1'][0]
    g2, be2 = params['g2'][0], params['be2'][0]

    def one(xb):
        qkv = xb @ wqkv.T + bqkv
        q, k, v = qkv[:, :4], qkv[:, 4:8], qkv[:, 8:]
        scores = jnp.einsum('sh,th->hst', q * (1.0 / math.sqrt(HEAD_DIM)), k)
        attn = jax.nn.softmax(scores, axis=-1)
        ctx = jnp.einsum('hst,th->sh', attn, v)
        sa = ctx @ wo.T + bo
        h1 = _layernorm(xb + sa, g1, be1)
        f = _gelu_exact(h1 @ w1.T + b1) @ w2.T + b2
        return _layernorm(h1 + f, g2, be2)

    return jax.vmap(one)(x)


def make_params():
    # Deterministic synthetic parameters matching PyTorch layer shapes.
    ks = jax.random.split(jax.random.PRNGKey(42), 6)
    f32 = jnp.float32
    params = {
        'wqkv': 0.3 * jax.random.normal(ks[0], (3 * D_MODEL, D_MODEL), f32),
        'bqkv': 0.1 * jax.random.normal(ks[1], (1, 3 * D_MODEL), f32),
        'wo':   0.3 * jax.random.normal(ks[2], (D_MODEL, D_MODEL), f32),
        'bo':   0.1 * jax.random.normal(ks[3], (1, D_MODEL), f32),
        'w1':   0.3 * jax.random.normal(ks[4], (D_FF, D_MODEL), f32),
        'b1':   jnp.zeros((1, D_FF), f32),
        'w2':   0.3 * jax.random.normal(ks[5], (D_MODEL, D_FF), f32),
        'b2':   jnp.zeros((1, D_MODEL), f32),
        'g1':   jnp.ones((1, D_MODEL), f32),   # LayerNorm default init
        'be1':  jnp.zeros((1, D_MODEL), f32),
        'g2':   jnp.ones((1, D_MODEL), f32),
        'be2':  jnp.zeros((1, D_MODEL), f32),
    }
    return params


if __name__ == "__main__":
    B, S = 2, 8
    x = jax.random.normal(jax.random.PRNGKey(0), (B, S, D_MODEL), jnp.float32)
    params = make_params()

    y = transformer_encoder_pallas(x, params)
    jax.block_until_ready(y)

    y_ref = transformer_encoder_ref(x, params)
    np.testing.assert_allclose(np.asarray(y), np.asarray(y_ref),
                               rtol=1e-4, atol=1e-4)
    assert y.shape == (B, S, D_MODEL)
    print("KERNEL_OK")
</pallas_src>

<mosaic_0001>
module attributes {stable_mosaic.version = 11 : i64} {
  func.func @encoder_layer_kernel(%arg0: memref<2x8x4xf32, #tpu.memory_space<vmem>>, %arg1: memref<24x16xf32, #tpu.memory_space<vmem>>, %arg2: memref<2x8x4xf32, #tpu.memory_space<vmem>>) attributes {dimension_semantics = [], scalar_prefetch = 0 : i64, scratch_operands = 0 : i64, tpu.core_type = #tpu.core_type<tc>} {
    %c0 = arith.constant 0 : index
    %c0_0 = arith.constant 0 : index
    %0 = vector.load %arg1[%c0, %c0_0] : memref<24x16xf32, #tpu.memory_space<vmem>>, vector<24x16xf32>
    %1 = vector.extract_strided_slice %0 {offsets = [0, 0], sizes = [4, 12], strides = [1, 1]} : vector<24x16xf32> to vector<4x12xf32>
    %2 = vector.extract_strided_slice %0 {offsets = [4, 0], sizes = [4, 4], strides = [1, 1]} : vector<24x16xf32> to vector<4x4xf32>
    %3 = vector.extract_strided_slice %0 {offsets = [8, 0], sizes = [4, 3], strides = [1, 1]} : vector<24x16xf32> to vector<4x3xf32>
    %4 = vector.extract_strided_slice %0 {offsets = [12, 0], sizes = [3, 4], strides = [1, 1]} : vector<24x16xf32> to vector<3x4xf32>
    %5 = vector.extract_strided_slice %0 {offsets = [15, 0], sizes = [1, 12], strides = [1, 1]} : vector<24x16xf32> to vector<1x12xf32>
    %6 = vector.extract_strided_slice %0 {offsets = [16, 0], sizes = [1, 4], strides = [1, 1]} : vector<24x16xf32> to vector<1x4xf32>
    %7 = vector.extract_strided_slice %0 {offsets = [17, 0], sizes = [1, 3], strides = [1, 1]} : vector<24x16xf32> to vector<1x3xf32>
    %8 = vector.extract_strided_slice %0 {offsets = [18, 0], sizes = [1, 4], strides = [1, 1]} : vector<24x16xf32> to vector<1x4xf32>
    %9 = vector.extract_strided_slice %0 {offsets = [19, 0], sizes = [1, 4], strides = [1, 1]} : vector<24x16xf32> to vector<1x4xf32>
    %10 = vector.extract_strided_slice %0 {offsets = [20, 0], sizes = [1, 4], strides = [1, 1]} : vector<24x16xf32> to vector<1x4xf32>
    %11 = vector.extract_strided_slice %0 {offsets = [21, 0], sizes = [1, 4], strides = [1, 1]} : vector<24x16xf32> to vector<1x4xf32>
    %12 = vector.extract_strided_slice %0 {offsets = [22, 0], sizes = [1, 4], strides = [1, 1]} : vector<24x16xf32> to vector<1x4xf32>
    %c0_1 = arith.constant 0 : index
    %c0_2 = arith.constant 0 : index
    %c0_3 = arith.constant 0 : index
    %13 = vector.load %arg0[%c0_1, %c0_2, %c0_3] : memref<2x8x4xf32, #tpu.memory_space<vmem>>, vector<1x8x4xf32>
    %14 = vector.shape_cast %13 : vector<1x8x4xf32> to vector<8x4xf32>
    %cst = arith.constant dense<0.000000e+00> : vector<8x12xf32>
    %15 = tpu.matmul %14, %1, %cst {dimension_numbers = #tpu.dot_dimension_numbers<[1], [0], [0], [1], [0, 0, 1, 1], [], []>} : vector<8x4xf32>, vector<4x12xf32>, vector<8x12xf32> -> vector<8x12xf32>
    %16 = vector.broadcast %5 : vector<1x12xf32> to vector<8x12xf32>
    %17 = arith.addf %15, %16 : vector<8x12xf32>
    %18 = vector.extract_strided_slice %17 {offsets = [0, 0], sizes = [8, 4], strides = [1, 1]} : vector<8x12xf32> to vector<8x4xf32>
    %cst_4 = arith.constant 1.000000e+00 : f32
    %19 = vector.broadcast %cst_4 : f32 to vector<8x4xf32>
    %20 = arith.mulf %18, %19 : vector<8x4xf32>
    %21 = vector.extract_strided_slice %17 {offsets = [0, 4], sizes = [8, 4], strides = [1, 1]} : vector<8x12xf32> to vector<8x4xf32>
    %22 = vector.extract_strided_slice %17 {offsets = [0, 8], sizes = [8, 4], strides = [1, 1]} : vector<8x12xf32> to vector<8x4xf32>
    %23 = tpu.transpose %20, [1, 0] : vector<8x4xf32> -> vector<4x8xf32>
    %24 = tpu.transpose %21, [1, 0] : vector<8x4xf32> -> vector<4x8xf32>
    %25 = tpu.transpose %22, [1, 0] : vector<8x4xf32> -> vector<4x8xf32>
    %26 = vector.shape_cast %23 : vector<4x8xf32> to vector<4x8x1xf32>
    %27 = vector.shape_cast %24 : vector<4x8xf32> to vector<4x1x8xf32>
    %28 = vector.broadcast %26 : vector<4x8x1xf32> to vector<4x8x8xf32>
    %29 = vector.broadcast %27 : vector<4x1x8xf32> to vector<4x8x8xf32>
    %30 = arith.mulf %28, %29 : vector<4x8x8xf32>
    %cst_5 = arith.constant dense<0xFF800000> : vector<4x8xf32>
    %31 = vector.multi_reduction <maximumf>, %30, %cst_5 [2] : vector<4x8x8xf32> to vector<4x8xf32>
    %32 = vector.shape_cast %31 : vector<4x8xf32> to vector<4x8x1xf32>
    %33 = vector.broadcast %32 : vector<4x8x1xf32> to vector<4x8x8xf32>
    %34 = arith.subf %30, %33 : vector<4x8x8xf32>
    %35 = math.exp %34 : vector<4x8x8xf32>
    %cst_6 = arith.constant dense<0.000000e+00> : vector<4x8xf32>
    %36 = vector.multi_reduction <add>, %35, %cst_6 [2] : vector<4x8x8xf32> to vector<4x8xf32>
    %37 = vector.shape_cast %36 : vector<4x8xf32> to vector<4x8x1xf32>
    %38 = vector.broadcast %37 : vector<4x8x1xf32> to vector<4x8x8xf32>
    %39 = arith.divf %35, %38 : vector<4x8x8xf32>
    %40 = vector.shape_cast %25 : vector<4x8xf32> to vector<4x1x8xf32>
    %41 = vector.broadcast %40 : vector<4x1x8xf32> to vector<4x8x8xf32>
    %42 = arith.mulf %39, %41 : vector<4x8x8xf32>
    %cst_7 = arith.constant dense<0.000000e+00> : vector<4x8xf32>
    %43 = vector.multi_reduction <add>, %42, %cst_7 [2] : vector<4x8x8xf32> to vector<4x8xf32>
    %44 = tpu.transpose %43, [1, 0] : vector<4x8xf32> -> vector<8x4xf32>
    %cst_8 = arith.constant dense<0.000000e+00> : vector<8x4xf32>
    %45 = tpu.matmul %44, %2, %cst_8 {dimension_numbers = #tpu.dot_dimension_numbers<[1], [0], [0], [1], [0, 0, 1, 1], [], []>} : vector<8x4xf32>, vector<4x4xf32>, vector<8x4xf32> -> vector<8x4xf32>
    %46 = vector.broadcast %6 : vector<1x4xf32> to vector<8x4xf32>
    %47 = arith.addf %45, %46 : vector<8x4xf32>
    %48 = arith.addf %14, %47 : vector<8x4xf32>
    %cst_9 = arith.constant dense<0.000000e+00> : vector<8xf32>
    %49 = vector.multi_reduction <add>, %48, %cst_9 [1] : vector<8x4xf32> to vector<8xf32>
    %50 = vector.shape_cast %49 : vector<8xf32> to vector<8x1xf32>
    %cst_10 = arith.constant 4.000000e+00 : f32
    %51 = vector.broadcast %cst_10 : f32 to vector<8x1xf32>
    %52 = arith.divf %50, %51 : vector<8x1xf32>
    %53 = vector.broadcast %52 : vector<8x1xf32> to vector<8x4xf32>
    %54 = arith.subf %48, %53 : vector<8x4xf32>
    %55 = arith.mulf %54, %54 : vector<8x4xf32>
    %cst_11 = arith.constant dense<0.000000e+00> : vector<8xf32>
    %56 = vector.multi_reduction <add>, %55, %cst_11 [1] : vector<8x4xf32> to vector<8xf32>
    %57 = vector.shape_cast %56 : vector<8xf32> to vector<8x1xf32>
    %cst_12 = arith.constant 4.000000e+00 : f32
    %58 = vector.broadcast %cst_12 : f32 to vector<8x1xf32>
    %59 = arith.divf %57, %58 : vector<8x1xf32>
    %60 = vector.broadcast %52 : vector<8x1xf32> to vector<8x4xf32>
    %61 = arith.subf %48, %60 : vector<8x4xf32>
    %cst_13 = arith.constant 9.99999974E-6 : f32
    %62 = vector.broadcast %cst_13 : f32 to vector<8x1xf32>
    %63 = arith.addf %59, %62 : vector<8x1xf32>
    %64 = math.rsqrt %63 : vector<8x1xf32>
    %65 = vector.broadcast %64 : vector<8x1xf32> to vector<8x4xf32>
    %66 = arith.mulf %61, %65 : vector<8x4xf32>
    %67 = vector.broadcast %9 : vector<1x4xf32> to vector<8x4xf32>
    %68 = arith.mulf %66, %67 : vector<8x4xf32>
    %69 = vector.broadcast %10 : vector<1x4xf32> to vector<8x4xf32>
    %70 = arith.addf %68, %69 : vector<8x4xf32>
    %cst_14 = arith.constant dense<0.000000e+00> : vector<8x3xf32>
    %71 = tpu.matmul %70, %3, %cst_14 {dimension_numbers = #tpu.dot_dimension_numbers<[1], [0], [0], [1], [0, 0, 1, 1], [], []>} : vector<8x4xf32>, vector<4x3xf32>, vector<8x3xf32> -> vector<8x3xf32>
    %72 = vector.broadcast %7 : vector<1x3xf32> to vector<8x3xf32>
    %73 = arith.addf %71, %72 : vector<8x3xf32>
    %cst_15 = arith.constant 5.000000e-01 : f32
    %74 = vector.broadcast %cst_15 : f32 to vector<8x3xf32>
    %75 = arith.mulf %74, %73 : vector<8x3xf32>
    %cst_16 = arith.constant 0.707106769 : f32
    %76 = vector.broadcast %cst_16 : f32 to vector<8x3xf32>
    %77 = arith.mulf %73, %76 : vector<8x3xf32>
    %78 = math.erf %77 : vector<8x3xf32>
    %cst_17 = arith.constant 1.000000e+00 : f32
    %79 = vector.broadcast %cst_17 : f32 to vector<8x3xf32>
    %80 = arith.addf %79, %78 : vector<8x3xf32>
    %81 = arith.mulf %75, %80 : vector<8x3xf32>
    %cst_18 = arith.constant dense<0.000000e+00> : vector<8x4xf32>
    %82 = tpu.matmul %81, %4, %cst_18 {dimension_numbers = #tpu.dot_dimension_numbers<[1], [0], [0], [1], [0, 0, 1, 1], [], []>} : vector<8x3xf32>, vector<3x4xf32>, vector<8x4xf32> -> vector<8x4xf32>
    %83 = vector.broadcast %8 : vector<1x4xf32> to vector<8x4xf32>
    %84 = arith.addf %82, %83 : vector<8x4xf32>
    %85 = arith.addf %70, %84 : vector<8x4xf32>
    %cst_19 = arith.constant dense<0.000000e+00> : vector<8xf32>
    %86 = vector.multi_reduction <add>, %85, %cst_19 [1] : vector<8x4xf32> to vector<8xf32>
    %87 = vector.shape_cast %86 : vector<8xf32> to vector<8x1xf32>
    %cst_20 = arith.constant 4.000000e+00 : f32
    %88 = vector.broadcast %cst_20 : f32 to vector<8x1xf32>
    %89 = arith.divf %87, %88 : vector<8x1xf32>
    %90 = vector.broadcast %89 : vector<8x1xf32> to vector<8x4xf32>
    %91 = arith.subf %85, %90 : vector<8x4xf32>
    %92 = arith.mulf %91, %91 : vector<8x4xf32>
    %cst_21 = arith.constant dense<0.000000e+00> : vector<8xf32>
    %93 = vector.multi_reduction <add>, %92, %cst_21 [1] : vector<8x4xf32> to vector<8xf32>
    %94 = vector.shape_cast %93 : vector<8xf32> to vector<8x1xf32>
    %cst_22 = arith.constant 4.000000e+00 : f32
    %95 = vector.broadcast %cst_22 : f32 to vector<8x1xf32>
    %96 = arith.divf %94, %95 : vector<8x1xf32>
    %97 = vector.broadcast %89 : vector<8x1xf32> to vector<8x4xf32>
    %98 = arith.subf %85, %97 : vector<8x4xf32>
    %cst_23 = arith.constant 9.99999974E-6 : f32
    %99 = vector.broadcast %cst_23 : f32 to vector<8x1xf32>
    %100 = arith.addf %96, %99 : vector<8x1xf32>
    %101 = math.rsqrt %100 : vector<8x1xf32>
    %102 = vector.broadcast %101 : vector<8x1xf32> to vector<8x4xf32>
    %103 = arith.mulf %98, %102 : vector<8x4xf32>
    %104 = vector.broadcast %11 : vector<1x4xf32> to vector<8x4xf32>
    %105 = arith.mulf %103, %104 : vector<8x4xf32>
    %106 = vector.broadcast %12 : vector<1x4xf32> to vector<8x4xf32>
    %107 = arith.addf %105, %106 : vector<8x4xf32>
    %c0_24 = arith.constant 0 : index
    %c0_25 = arith.constant 0 : index
    %c0_26 = arith.constant 0 : index
    %108 = vector.load %arg2[%c0_24, %c0_25, %c0_26] : memref<2x8x4xf32, #tpu.memory_space<vmem>>, vector<1x8x4xf32>
    %109 = vector.shape_cast %108 : vector<1x8x4xf32> to vector<8x4xf32>
    %110 = vector.shape_cast %107 : vector<8x4xf32> to vector<1x8x4xf32>
    tpu.vector_store %arg2[%c0_24, %c0_25, %c0_26], %110 {strides = array<i32>} : memref<2x8x4xf32, #tpu.memory_space<vmem>>, vector<1x8x4xf32>,
    %c1 = arith.constant 1 : index
    %c0_27 = arith.constant 0 : index
    %c0_28 = arith.constant 0 : index
    %111 = vector.load %arg0[%c1, %c0_27, %c0_28] : memref<2x8x4xf32, #tpu.memory_space<vmem>>, vector<1x8x4xf32>
    %112 = vector.shape_cast %111 : vector<1x8x4xf32> to vector<8x4xf32>
    %cst_29 = arith.constant dense<0.000000e+00> : vector<8x12xf32>
    %113 = tpu.matmul %112, %1, %cst_29 {dimension_numbers = #tpu.dot_dimension_numbers<[1], [0], [0], [1], [0, 0, 1, 1], [], []>} : vector<8x4xf32>, vector<4x12xf32>, vector<8x12xf32> -> vector<8x12xf32>
    %114 = vector.broadcast %5 : vector<1x12xf32> to vector<8x12xf32>
    %115 = arith.addf %113, %114 : vector<8x12xf32>
    %116 = vector.extract_strided_slice %115 {offsets = [0, 0], sizes = [8, 4], strides = [1, 1]} : vector<8x12xf32> to vector<8x4xf32>
    %cst_30 = arith.constant 1.000000e+00 : f32
    %117 = vector.broadcast %cst_30 : f32 to vector<8x4xf32>
    %118 = arith.mulf %116, %117 : vector<8x4xf32>
    %119 = vector.extract_strided_slice %115 {offsets = [0, 4], sizes = [8, 4], strides = [1, 1]} : vector<8x12xf32> to vector<8x4xf32>
    %120 = vector.extract_strided_slice %115 {offsets = [0, 8], sizes = [8, 4], strides = [1, 1]} : vector<8x12xf32> to vector<8x4xf32>
    %121 = tpu.transpose %118, [1, 0] : vector<8x4xf32> -> vector<4x8xf32>
    %122 = tpu.transpose %119, [1, 0] : vector<8x4xf32> -> vector<4x8xf32>
    %123 = tpu.transpose %120, [1, 0] : vector<8x4xf32> -> vector<4x8xf32>
    %124 = vector.shape_cast %121 : vector<4x8xf32> to vector<4x8x1xf32>
    %125 = vector.shape_cast %122 : vector<4x8xf32> to vector<4x1x8xf32>
    %126 = vector.broadcast %124 : vector<4x8x1xf32> to vector<4x8x8xf32>
    %127 = vector.broadcast %125 : vector<4x1x8xf32> to vector<4x8x8xf32>
    %128 = arith.mulf %126, %127 : vector<4x8x8xf32>
    %cst_31 = arith.constant dense<0xFF800000> : vector<4x8xf32>
    %129 = vector.multi_reduction <maximumf>, %128, %cst_31 [2] : vector<4x8x8xf32> to vector<4x8xf32>
    %130 = vector.shape_cast %129 : vector<4x8xf32> to vector<4x8x1xf32>
    %131 = vector.broadcast %130 : vector<4x8x1xf32> to vector<4x8x8xf32>
    %132 = arith.subf %128, %131 : vector<4x8x8xf32>
    %133 = math.exp %132 : vector<4x8x8xf32>
    %cst_32 = arith.constant dense<0.000000e+00> : vector<4x8xf32>
    %134 = vector.multi_reduction <add>, %133, %cst_32 [2] : vector<4x8x8xf32> to vector<4x8xf32>
    %135 = vector.shape_cast %134 : vector<4x8xf32> to vector<4x8x1xf32>
    %136 = vector.broadcast %135 : vector<4x8x1xf32> to vector<4x8x8xf32>
    %137 = arith.divf %133, %136 : vector<4x8x8xf32>
    %138 = vector.shape_cast %123 : vector<4x8xf32> to vector<4x1x8xf32>
    %139 = vector.broadcast %138 : vector<4x1x8xf32> to vector<4x8x8xf32>
    %140 = arith.mulf %137, %139 : vector<4x8x8xf32>
    %cst_33 = arith.constant dense<0.000000e+00> : vector<4x8xf32>
    %141 = vector.multi_reduction <add>, %140, %cst_33 [2] : vector<4x8x8xf32> to vector<4x8xf32>
    %142 = tpu.transpose %141, [1, 0] : vector<4x8xf32> -> vector<8x4xf32>
    %cst_34 = arith.constant dense<0.000000e+00> : vector<8x4xf32>
    %143 = tpu.matmul %142, %2, %cst_34 {dimension_numbers = #tpu.dot_dimension_numbers<[1], [0], [0], [1], [0, 0, 1, 1], [], []>} : vector<8x4xf32>, vector<4x4xf32>, vector<8x4xf32> -> vector<8x4xf32>
    %144 = vector.broadcast %6 : vector<1x4xf32> to vector<8x4xf32>
    %145 = arith.addf %143, %144 : vector<8x4xf32>
    %146 = arith.addf %112, %145 : vector<8x4xf32>
    %cst_35 = arith.constant dense<0.000000e+00> : vector<8xf32>
    %147 = vector.multi_reduction <add>, %146, %cst_35 [1] : vector<8x4xf32> to vector<8xf32>
    %148 = vector.shape_cast %147 : vector<8xf32> to vector<8x1xf32>
    %cst_36 = arith.constant 4.000000e+00 : f32
    %149 = vector.broadcast %cst_36 : f32 to vector<8x1xf32>
    %150 = arith.divf %148, %149 : vector<8x1xf32>
    %151 = vector.broadcast %150 : vector<8x1xf32> to vector<8x4xf32>
    %152 = arith.subf %146, %151 : vector<8x4xf32>
    %153 = arith.mulf %152, %152 : vector<8x4xf32>
    %cst_37 = arith.constant dense<0.000000e+00> : vector<8xf32>
    %154 = vector.multi_reduction <add>, %153, %cst_37 [1] : vector<8x4xf32> to vector<8xf32>
    %155 = vector.shape_cast %154 : vector<8xf32> to vector<8x1xf32>
    %cst_38 = arith.constant 4.000000e+00 : f32
    %156 = vector.broadcast %cst_38 : f32 to vector<8x1xf32>
    %157 = arith.divf %155, %156 : vector<8x1xf32>
    %158 = vector.broadcast %150 : vector<8x1xf32> to vector<8x4xf32>
    %159 = arith.subf %146, %158 : vector<8x4xf32>
    %cst_39 = arith.constant 9.99999974E-6 : f32
    %160 = vector.broadcast %cst_39 : f32 to vector<8x1xf32>
    %161 = arith.addf %157, %160 : vector<8x1xf32>
    %162 = math.rsqrt %161 : vector<8x1xf32>
    %163 = vector.broadcast %162 : vector<8x1xf32> to vector<8x4xf32>
    %164 = arith.mulf %159, %163 : vector<8x4xf32>
    %165 = vector.broadcast %9 : vector<1x4xf32> to vector<8x4xf32>
    %166 = arith.mulf %164, %165 : vector<8x4xf32>
    %167 = vector.broadcast %10 : vector<1x4xf32> to vector<8x4xf32>
    %168 = arith.addf %166, %167 : vector<8x4xf32>
    %cst_40 = arith.constant dense<0.000000e+00> : vector<8x3xf32>
    %169 = tpu.matmul %168, %3, %cst_40 {dimension_numbers = #tpu.dot_dimension_numbers<[1], [0], [0], [1], [0, 0, 1, 1], [], []>} : vector<8x4xf32>, vector<4x3xf32>, vector<8x3xf32> -> vector<8x3xf32>
    %170 = vector.broadcast %7 : vector<1x3xf32> to vector<8x3xf32>
    %171 = arith.addf %169, %170 : vector<8x3xf32>
    %cst_41 = arith.constant 5.000000e-01 : f32
    %172 = vector.broadcast %cst_41 : f32 to vector<8x3xf32>
    %173 = arith.mulf %172, %171 : vector<8x3xf32>
    %cst_42 = arith.constant 0.707106769 : f32
    %174 = vector.broadcast %cst_42 : f32 to vector<8x3xf32>
    %175 = arith.mulf %171, %174 : vector<8x3xf32>
    %176 = math.erf %175 : vector<8x3xf32>
    %cst_43 = arith.constant 1.000000e+00 : f32
    %177 = vector.broadcast %cst_43 : f32 to vector<8x3xf32>
    %178 = arith.addf %177, %176 : vector<8x3xf32>
    %179 = arith.mulf %173, %178 : vector<8x3xf32>
    %cst_44 = arith.constant dense<0.000000e+00> : vector<8x4xf32>
    %180 = tpu.matmul %179, %4, %cst_44 {dimension_numbers = #tpu.dot_dimension_numbers<[1], [0], [0], [1], [0, 0, 1, 1], [], []>} : vector<8x3xf32>, vector<3x4xf32>, vector<8x4xf32> -> vector<8x4xf32>
    %181 = vector.broadcast %8 : vector<1x4xf32> to vector<8x4xf32>
    %182 = arith.addf %180, %181 : vector<8x4xf32>
    %183 = arith.addf %168, %182 : vector<8x4xf32>
    %cst_45 = arith.constant dense<0.000000e+00> : vector<8xf32>
    %184 = vector.multi_reduction <add>, %183, %cst_45 [1] : vector<8x4xf32> to vector<8xf32>
    %185 = vector.shape_cast %184 : vector<8xf32> to vector<8x1xf32>
    %cst_46 = arith.constant 4.000000e+00 : f32
    %186 = vector.broadcast %cst_46 : f32 to vector<8x1xf32>
    %187 = arith.divf %185, %186 : vector<8x1xf32>
    %188 = vector.broadcast %187 : vector<8x1xf32> to vector<8x4xf32>
    %189 = arith.subf %183, %188 : vector<8x4xf32>
    %190 = arith.mulf %189, %189 : vector<8x4xf32>
    %cst_47 = arith.constant dense<0.000000e+00> : vector<8xf32>
    %191 = vector.multi_reduction <add>, %190, %cst_47 [1] : vector<8x4xf32> to vector<8xf32>
    %192 = vector.shape_cast %191 : vector<8xf32> to vector<8x1xf32>
    %cst_48 = arith.constant 4.000000e+00 : f32
    %193 = vector.broadcast %cst_48 : f32 to vector<8x1xf32>
    %194 = arith.divf %192, %193 : vector<8x1xf32>
    %195 = vector.broadcast %187 : vector<8x1xf32> to vector<8x4xf32>
    %196 = arith.subf %183, %195 : vector<8x4xf32>
    %cst_49 = arith.constant 9.99999974E-6 : f32
    %197 = vector.broadcast %cst_49 : f32 to vector<8x1xf32>
    %198 = arith.addf %194, %197 : vector<8x1xf32>
    %199 = math.rsqrt %198 : vector<8x1xf32>
    %200 = vector.broadcast %199 : vector<8x1xf32> to vector<8x4xf32>
    %201 = arith.mulf %196, %200 : vector<8x4xf32>
    %202 = vector.broadcast %11 : vector<1x4xf32> to vector<8x4xf32>
    %203 = arith.mulf %201, %202 : vector<8x4xf32>
    %204 = vector.broadcast %12 : vector<1x4xf32> to vector<8x4xf32>
    %205 = arith.addf %203, %204 : vector<8x4xf32>
    %c1_50 = arith.constant 1 : index
    %c0_51 = arith.constant 0 : index
    %c0_52 = arith.constant 0 : index
    %206 = vector.load %arg2[%c1_50, %c0_51, %c0_52] : memref<2x8x4xf32, #tpu.memory_space<vmem>>, vector<1x8x4xf32>
    %207 = vector.shape_cast %206 : vector<1x8x4xf32> to vector<8x4xf32>
    %208 = vector.shape_cast %205 : vector<8x4xf32> to vector<1x8x4xf32>
    tpu.vector_store %arg2[%c1_50, %c0_51, %c0_52], %208 {strides = array<i32>} : memref<2x8x4xf32, #tpu.memory_space<vmem>>, vector<1x8x4xf32>,
    return
  }
}

</mosaic_0001>

<llo_original>
// kernel: tpu_custom_call.1
$region0: #{tpu_custom_call.1}
  #allocation0 [shape = 'u32[]', space=smem, size = 0x4, offset = 0x4, fixed_abs, tag = 'smem constant byte address 0x4 - core index']
  #allocation1 [shape = 'u32[144,128]{1,0:T(1,128)}', space=vmem, size = 0x12000, scoped, tag = 'internal scratch']
  %s0 = inlined_call_operand.vmem [shape: f32[2,8,4], index: 0, kind: input, shape index: {}]
  %s1 = inlined_call_operand.vmem [shape: f32[24,16], index: 1, kind: input, shape index: {}]
  %s2 = inlined_call_operand.vmem [shape: f32[2,8,4], index: 2, kind: output, shape index: {}]
  %s3 = sld [smem:[#allocation0]]
  $region18: #{tpu_custom_call.1} parent=0
    _
  %s5 = ssub.s32 1, %s3
  %s6 = scalar_select 0, %s5, %s3
  // Predicated region
  $region2: #{tpu_custom_call.1} parent=0 // pred_check
    _
  $region3: #{tpu_custom_call.1} parent=0 // pred_check_branch
    %8 = sbr.rel (0) target = $region5
  $region4: #{tpu_custom_call.1} parent=0 // pred_region
    _
  $region5: #{tpu_custom_call.1} parent=0 // pred_fallthru
    _
  // Predicated region
  $region6: #{tpu_custom_call.1} parent=0 // pred_check
    _
  $region7: #{tpu_custom_call.1} parent=0 // pred_check_branch
    %10 = sbr.rel (0) target = $region9
  $region8: #{tpu_custom_call.1} parent=0 // pred_region
    _
  $region9: #{tpu_custom_call.1} parent=0 // pred_fallthru
    _
  %v11 = vld [vmem:[%s1] sm:$0xff]
  %v12 = vld [vmem:[%s1 + $0x8] sm:$0xff]
  %v13 = vld [vmem:[%s1 + $0x10] sm:$0xff]
  %v14 = vld [vmem:[%s0] sm:$0xff]
  %v15 = vlaneseq
  %v16 = vshrl.u32 %v15, 7
  %v17 = vsub.s32 7, %v16
  %v18 = vrot.slane %v12, %v17
  %vm19 = vcmask 31744
  %v21 = vsel %vm19, %v14, 0
  %vm23 = vcmask 1043456
  %v25 = vsel %vm23, %v11, 0
  %27 = vmatprep.subr.mxu0 0.0
  %28 = vmatpush1.msra.mxu0 %v25
  %29 = vmatprep.subr.mxu0 0.0
  %30 = vmatpush1.msra.mxu0 0.0
  %31 = vmatprep.subr.mxu0 0.0
  %32 = vmatpush1.msra.mxu0 0.0
  %33 = vmatprep.subr.mxu0 0.0
  %34 = vmatpush1.msra.mxu0 0.0
  %35 = vmatprep.subr.mxu0 0.0
  %36 = vmatpush1.msra.mxu0 0.0
  %37 = vmatprep.subr.mxu0 0.0
  %38 = vmatpush1.msra.mxu0 0.0
  %39 = vmatprep.subr.mxu0 0.0
  %40 = vmatpush1.msra.mxu0 0.0
  %41 = vmatprep.subr.mxu0 0.0
  %42 = vmatpush1.msra.mxu0 0.0
  %43 = vmatprep.subr.mxu0 0.0
  %44 = vmatpush1.msra.mxu0 0.0
  %45 = vmatprep.subr.mxu0 0.0
  %46 = vmatpush1.msra.mxu0 0.0
  %47 = vmatprep.subr.mxu0 0.0
  %48 = vmatpush1.msra.mxu0 0.0
  %49 = vmatprep.subr.mxu0 0.0
  %50 = vmatpush1.msra.mxu0 0.0
  %51 = vmatprep.subr.mxu0 0.0
  %52 = vmatpush1.msra.mxu0 0.0
  %53 = vmatprep.subr.mxu0 0.0
  %54 = vmatpush1.msra.mxu0 0.0
  %55 = vmatprep.subr.mxu0 0.0
  %56 = vmatpush1.msra.mxu0 0.0
  %57 = vmatprep.subr.mxu0 0.0
  %58 = vmatpush1.msra.mxu0 0.0
  %59 = vmatprep.subr.mxu0 0.0
  %60 = vmatpush1.msra.mxu0 0.0
  %61 = vmatprep.subr.mxu0 0.0
  %62 = vmatpush1.msra.mxu0 0.0
  %63 = vmatprep.subr.mxu0 0.0
  %64 = vmatpush1.msra.mxu0 0.0
  %65 = vmatprep.subr.mxu0 0.0
  %66 = vmatpush1.msra.mxu0 0.0
  %67 = vmatprep.subr.mxu0 0.0
  %68 = vmatpush1.msra.mxu0 0.0
  %69 = vmatprep.subr.mxu0 0.0
  %70 = vmatpush1.msra.mxu0 0.0
  %71 = vmatprep.subr.mxu0 0.0
  %72 = vmatpush1.msra.mxu0 0.0
  %73 = vmatprep.subr.mxu0 0.0
  %74 = vmatpush1.msra.mxu0 0.0
  %75 = vmatprep.subr.mxu0 0.0
  %76 = vmatpush1.msra.mxu0 0.0
  %77 = vmatprep.subr.mxu0 0.0
  %78 = vmatpush1.msra.mxu0 0.0
  %79 = vmatprep.subr.mxu0 0.0
  %80 = vmatpush1.msra.mxu0 0.0
  %81 = vmatprep.subr.mxu0 0.0
  %82 = vmatpush1.msra.mxu0 0.0
  %83 = vmatprep.subr.mxu0 0.0
  %84 = vmatpush1.msra.mxu0 0.0
  %85 = vmatprep.subr.mxu0 0.0
  %86 = vmatpush1.msra.mxu0 0.0
  %87 = vmatprep.subr.mxu0 0.0
  %88 = vmatpush1.msra.mxu0 0.0
  %89 = vmatprep.subr.mxu0 0.0
  %90 = vmatpush1.msra.mxu0 0.0
  %91 = vmatprep.mubr.f32.mxu0 0.0
  %92 = vmatmul.mubr.f32.gmra.mrb[0].mxu0 %v21
  %v93 = vpop.f32.mrb[0].mxu0
  %v94 = vadd.f32 %v18, %v93
  %v95 = vpop.f32.mrb[0].mxu0
  %96 = vdwg.mxu0
  %97 = vxpose.xlu0.b32.start [1/16] %v94, 128
  %98 = vxpose.xlu0.b32.cont [2/16] 0.0, 128
  %99 = vxpose.xlu0.b32.cont [3/16] 0.0, 128
  %100 = vxpose.xlu0.b32.cont [4/16] 0.0, 128
  %101 = vxpose.xlu0.b32.cont [5/16] 0.0, 128
  %102 = vxpose.xlu0.b32.cont [6/16] 0.0, 128
  %103 = vxpose.xlu0.b32.cont [7/16] 0.0, 128
  %104 = vxpose.xlu0.b32.cont [8/16] 0.0, 128
  %105 = vxpose.xlu0.b32.cont [9/16] 0.0, 128
  %106 = vxpose.xlu0.b32.cont [10/16] 0.0, 128
  %107 = vxpose.xlu0.b32.cont [11/16] 0.0, 128
  %108 = vxpose.xlu0.b32.cont [12/16] 0.0, 128
  %109 = vxpose.xlu0.b32.cont [13/16] 0.0, 128
  %110 = vxpose.xlu0.b32.cont [14/16] 0.0, 128
  %111 = vxpose.xlu0.b32.cont [15/16] 0.0, 128
  %112 = vxpose.xlu0.b32.end [16/16] 0.0, 128
  %v113 = vpop.trf.xlu0
  %v114 = vpop.trf.xlu0
  %v115 = vpop.trf.xlu0
  %v116 = vpop.trf.xlu0
  %v117 = vpop.trf.xlu0
  %v118 = vpop.trf.xlu0
  %v119 = vpop.trf.xlu0
  %v120 = vpop.trf.xlu0
  %v121 = vpop.trf.xlu0
  %v122 = vpop.trf.xlu0
  %v123 = vpop.trf.xlu0
  %v124 = vpop.trf.xlu0
  %v125 = vpop.trf.xlu0
  %v126 = vpop.trf.xlu0
  %v127 = vpop.trf.xlu0
  %v128 = vpop.trf.xlu0
  %130 = vrot.lane.b32.xlu0 %v94, 124
  %v131 = vpop.permute.xlu0 %130
  %133 = vxpose.xlu0.b32.start [1/16] %v131, 128
  %134 = vxpose.xlu0.b32.cont [2/16] 0.0, 128
  %135 = vxpose.xlu0.b32.cont [3/16] 0.0, 128
  %136 = vxpose.xlu0.b32.cont [4/16] 0.0, 128
  %137 = vxpose.xlu0.b32.cont [5/16] 0.0, 128
  %138 = vxpose.xlu0.b32.cont [6/16] 0.0, 128
  %139 = vxpose.xlu0.b32.cont [7/16] 0.0, 128
  %140 = vxpose.xlu0.b32.cont [8/16] 0.0, 128
  %141 = vxpose.xlu0.b32.cont [9/16] 0.0, 128
  %142 = vxpose.xlu0.b32.cont [10/16] 0.0, 128
  %143 = vxpose.xlu0.b32.cont [11/16] 0.0, 128
  %144 = vxpose.xlu0.b32.cont [12/16] 0.0, 128
  %145 = vxpose.xlu0.b32.cont [13/16] 0.0, 128
  %146 = vxpose.xlu0.b32.cont [14/16] 0.0, 128
  %147 = vxpose.xlu0.b32.cont [15/16] 0.0, 128
  %148 = vxpose.xlu0.b32.end [16/16] 0.0, 128
  %v149 = vpop.trf.xlu0
  %v150 = vpop.trf.xlu0
  %v151 = vpop.trf.xlu0
  %v152 = vpop.trf.xlu0
  %v153 = vpop.trf.xlu0
  %v154 = vpop.trf.xlu0
  %v155 = vpop.trf.xlu0
  %v156 = vpop.trf.xlu0
  %v157 = vpop.trf.xlu0
  %v158 = vpop.trf.xlu0
  %v159 = vpop.trf.xlu0
  %v160 = vpop.trf.xlu0
  %v161 = vpop.trf.xlu0
  %v162 = vpop.trf.xlu0
  %v163 = vpop.trf.xlu0
  %v164 = vpop.trf.xlu0
  %165 = vrot.lane.b32.xlu0 %v94, 120
  %v166 = vpop.permute.xlu0 %165
  %168 = vxpose.xlu0.b32.start [1/16] %v166, 128
  %169 = vxpose.xlu0.b32.cont [2/16] 0.0, 128
  %170 = vxpose.xlu0.b32.cont [3/16] 0.0, 128
  %171 = vxpose.xlu0.b32.cont [4/16] 0.0, 128
  %172 = vxpose.xlu0.b32.cont [5/16] 0.0, 128
  %173 = vxpose.xlu0.b32.cont [6/16] 0.0, 128
  %174 = vxpose.xlu0.b32.cont [7/16] 0.0, 128
  %175 = vxpose.xlu0.b32.cont [8/16] 0.0, 128
  %176 = vxpose.xlu0.b32.cont [9/16] 0.0, 128
  %177 = vxpose.xlu0.b32.cont [10/16] 0.0, 128
  %178 = vxpose.xlu0.b32.cont [11/16] 0.0, 128
  %179 = vxpose.xlu0.b32.cont [12/16] 0.0, 128
  %180 = vxpose.xlu0.b32.cont [13/16] 0.0, 128
  %181 = vxpose.xlu0.b32.cont [14/16] 0.0, 128
  %182 = vxpose.xlu0.b32.cont [15/16] 0.0, 128
  %183 = vxpose.xlu0.b32.end [16/16] 0.0, 128
  %v184 = vpop.trf.xlu0
  %v185 = vpop.trf.xlu0
  %v186 = vpop.trf.xlu0
  %v187 = vpop.trf.xlu0
  %v188 = vpop.trf.xlu0
  %v189 = vpop.trf.xlu0
  %v190 = vpop.trf.xlu0
  %v191 = vpop.trf.xlu0
  %v192 = vpop.trf.xlu0
  %v193 = vpop.trf.xlu0
  %v194 = vpop.trf.xlu0
  %v195 = vpop.trf.xlu0
  %v196 = vpop.trf.xlu0
  %v197 = vpop.trf.xlu0
  %v198 = vpop.trf.xlu0
  %v199 = vpop.trf.xlu0
  %v200 = vlaneseq
  %v201 = vshrl.u32 %v200, 7
  %v202 = vsub.s32 0, %v201
  %v203 = vrot.slane %v113, %v202
  %205 = vbcast.lane.b32.xlu0 %v203, 256
  %v206 = vpop.permute.xlu0 %205
  %v207 = vlaneseq
  %v208 = vshrl.u32 %v207, 7
  %v209 = vsub.s32 1, %v208
  %v210 = vrot.slane %v113, %v209
  %212 = vbcast.lane.b32.xlu0 %v210, 256
  %v213 = vpop.permute.xlu0 %212
  %v214 = vlaneseq
  %v215 = vshrl.u32 %v214, 7
  %v216 = vsub.s32 2, %v215
  %v217 = vrot.slane %v113, %v216
  %219 = vbcast.lane.b32.xlu0 %v217, 256
  %v220 = vpop.permute.xlu0 %219
  %v221 = vlaneseq
  %v222 = vshrl.u32 %v221, 7
  %v223 = vsub.s32 3, %v222
  %v224 = vrot.slane %v113, %v223
  %226 = vbcast.lane.b32.xlu0 %v224, 256
  %v227 = vpop.permute.xlu0 %226
  %v230 = vunpack.c.l.s4 1966171168
  %v231 = vunpack.c.0.s8 %v230
  %v232 = vlaneseq
  %v233 = vshrl.u32 %v232, 7
  %v234 = vsub.s32 %v231, %v233
  %v235 = vrot.slane %v149, %v234
  %v236 = vcombine.high %v235, %v235
  %v238 = vunpack.c.l.s4 1966171168
  %v239 = vunpack.c.0.s8 %v238
  %v240 = vlaneseq
  %v241 = vshrl.u32 %v240, 7
  %v242 = vsub.s32 %v239, %v241
  %v243 = vrot.slane %v235, %v242
  %v245 = vunpack.c.l.s4 1966171168
  %v246 = vunpack.c.0.s8 %v245
  %v247 = vlaneseq
  %v248 = vshrl.u32 %v247, 7
  %v249 = vsub.s32 %v246, %v248
  %v250 = vrot.slane %v236, %v249
  %v251 = vcombine.high %v243, %v243
  %v252 = vcombine.high %v250, %v250
  %v253 = vlaneseq
  %v254 = vshrl.u32 %v253, 7
  %v255 = vsub.s32 0, %v254
  %v256 = vrot.slane %v243, %v255
  %v257 = vlaneseq
  %v258 = vshrl.u32 %v257, 7
  %v259 = vsub.s32 0, %v258
  %v260 = vrot.slane %v250, %v259
  %v261 = vlaneseq
  %v262 = vshrl.u32 %v261, 7
  %v263 = vsub.s32 0, %v262
  %v264 = vrot.slane %v251, %v263
  %v265 = vlaneseq
  %v266 = vshrl.u32 %v265, 7
  %v267 = vsub.s32 0, %v266
  %v268 = vrot.slane %v252, %v267
  %v273 = vmul.f32 %v206, %v256
  %v274 = vmul.f32 %v213, %v260
  %v275 = vmul.f32 %v220, %v264
  %v276 = vmul.f32 %v227, %v268
  %vm277 = vcmask 64512
  %v278 = vsel %vm277, %v273, -inf
  %279 = vmax.xlane.f32.xlu0 %v278
  %v280 = vpop.xlane.xlu0 %279
  %v281 = vsel %vm277, %v274, -inf
  %282 = vmax.xlane.f32.xlu0 %v281
  %v283 = vpop.xlane.xlu0 %282
  %v284 = vsel %vm277, %v275, -inf
  %285 = vmax.xlane.f32.xlu0 %v284
  %v286 = vpop.xlane.xlu0 %285
  %v287 = vsel %vm277, %v276, -inf
  %288 = vmax.xlane.f32.xlu0 %v287
  %v289 = vpop.xlane.xlu0 %288
  %v290 = vsub.f32 %v273, %v280
  %v291 = vsub.f32 %v274, %v283
  %v292 = vsub.f32 %v275, %v286
  %v293 = vsub.f32 %v276, %v289
  %v294 = vmul.f32 %v290, 1.442695
  %v295 = vpow.pop %v294
  %v296 = vmul.f32 %v291, 1.442695
  %v297 = vpow.pop %v296
  %v298 = vmul.f32 %v292, 1.442695
  %v299 = vpow.pop %v298
  %v300 = vmul.f32 %v293, 1.442695
  %v301 = vpow.pop %v300
  %v302 = vsel %vm277, %v295, 0.0
  %303 = vadd.xlane.f32.xlu0 %v302
  %v304 = vpop.xlane.xlu0 %303
  %v305 = vsel %vm277, %v297, 0.0
  %306 = vadd.xlane.f32.xlu0 %v305
  %v307 = vpop.xlane.xlu0 %306
  %v308 = vsel %vm277, %v299, 0.0
  %309 = vadd.xlane.f32.xlu0 %v308
  %v310 = vpop.xlane.xlu0 %309
  %v311 = vsel %vm277, %v301, 0.0
  %312 = vadd.xlane.f32.xlu0 %v311
  %v313 = vpop.xlane.xlu0 %312
  %v314 = vrcp.pop %v304
  %v315 = vmul.f32 %v295, %v314
  %v316 = vrcp.pop %v307
  %v317 = vmul.f32 %v297, %v316
  %v318 = vrcp.pop %v310
  %v319 = vmul.f32 %v299, %v318
  %v320 = vrcp.pop %v313
  %v321 = vmul.f32 %v301, %v320
  %v324 = vunpack.c.l.s4 1966171168
  %v325 = vunpack.c.0.s8 %v324
  %v326 = vlaneseq
  %v327 = vshrl.u32 %v326, 7
  %v328 = vsub.s32 %v325, %v327
  %v329 = vrot.slane %v184, %v328
  %v330 = vcombine.high %v329, %v329
  %v332 = vunpack.c.l.s4 1966171168
  %v333 = vunpack.c.0.s8 %v332
  %v334 = vlaneseq
  %v335 = vshrl.u32 %v334, 7
  %v336 = vsub.s32 %v333, %v335
  %v337 = vrot.slane %v329, %v336
  %v339 = vunpack.c.l.s4 1966171168
  %v340 = vunpack.c.0.s8 %v339
  %v341 = vlaneseq
  %v342 = vshrl.u32 %v341, 7
  %v343 = vsub.s32 %v340, %v342
  %v344 = vrot.slane %v330, %v343
  %v345 = vcombine.high %v337, %v337
  %v346 = vcombine.high %v344, %v344
  %v347 = vlaneseq
  %v348 = vshrl.u32 %v347, 7
  %v349 = vsub.s32 0, %v348
  %v350 = vrot.slane %v337, %v349
  %v351 = vlaneseq
  %v352 = vshrl.u32 %v351, 7
  %v353 = vsub.s32 0, %v352
  %v354 = vrot.slane %v344, %v353
  %v355 = vlaneseq
  %v356 = vshrl.u32 %v355, 7
  %v357 = vsub.s32 0, %v356
  %v358 = vrot.slane %v345, %v357
  %v359 = vlaneseq
  %v360 = vshrl.u32 %v359, 7
  %v361 = vsub.s32 0, %v360
  %v362 = vrot.slane %v346, %v361
  %v367 = vmul.f32 %v315, %v350
  %v368 = vmul.f32 %v317, %v354
  %v369 = vmul.f32 %v319, %v358
  %v370 = vmul.f32 %v321, %v362
  %v371 = vsel %vm277, %v367, 0.0
  %372 = vadd.xlane.f32.xlu0 %v371
  %v373 = vpop.xlane.xlu0 %372
  %v374 = vsel %vm277, %v368, 0.0
  %375 = vadd.xlane.f32.xlu0 %v374
  %v376 = vpop.xlane.xlu0 %375
  %v377 = vsel %vm277, %v369, 0.0
  %378 = vadd.xlane.f32.xlu0 %v377
  %v379 = vpop.xlane.xlu0 %378
  %v380 = vsel %vm277, %v370, 0.0
  %381 = vadd.xlane.f32.xlu0 %v380
  %v382 = vpop.xlane.xlu0 %381
  %v387 = vlaneseq
  %v388 = vand.u32 %v387, 127
  %v389 = vlaneseq
  %v390 = vshrl.u32 %v389, 7
  %v391 = vsub.s32 %v388, %v390
  %v392 = vrot.slane %v373, %v391
  %v393 = vlaneseq
  %v394 = vshrl.u32 %v393, 7
  %v395 = vsub.s32 %v388, %v394
  %v396 = vrot.slane %v376, %v395
  %v397 = vlaneseq
  %v398 = vshrl.u32 %v397, 7
  %v399 = vsub.s32 %v388, %v398
  %v400 = vrot.slane %v379, %v399
  %v401 = vlaneseq
  %v402 = vshrl.u32 %v401, 7
  %v403 = vsub.s32 %v388, %v402
  %v404 = vrot.slane %v382, %v403
  %vm405 = vcmask 1041409
  %v406 = vsel %vm405, %v396, %v392
  %vm407 = vcmask 1042434
  %v408 = vsel %vm407, %v400, %v406
  %vm409 = vcmask 1043459
  %v410 = vsel %vm409, %v404, %v408
  %412 = vxpose.xlu0.b32.start [1/16] %v410, 128
  %413 = vxpose.xlu0.b32.cont [2/16] 0.0, 128
  %414 = vxpose.xlu0.b32.cont [3/16] 0.0, 128
  %415 = vxpose.xlu0.b32.cont [4/16] 0.0, 128
  %416 = vxpose.xlu0.b32.cont [5/16] 0.0, 128
  %417 = vxpose.xlu0.b32.cont [6/16] 0.0, 128
  %418 = vxpose.xlu0.b32.cont [7/16] 0.0, 128
  %419 = vxpose.xlu0.b32.cont [8/16] 0.0, 128
  %420 = vxpose.xlu0.b32.cont [9/16] 0.0, 128
  %421 = vxpose.xlu0.b32.cont [10/16] 0.0, 128
  %422 = vxpose.xlu0.b32.cont [11/16] 0.0, 128
  %423 = vxpose.xlu0.b32.cont [12/16] 0.0, 128
  %424 = vxpose.xlu0.b32.cont [13/16] 0.0, 128
  %425 = vxpose.xlu0.b32.cont [14/16] 0.0, 128
  %426 = vxpose.xlu0.b32.cont [15/16] 0.0, 128
  %427 = vxpose.xlu0.b32.end [16/16] 0.0, 128
  %v428 = vpop.trf.xlu0
  %v429 = vpop.trf.xlu0
  %v430 = vpop.trf.xlu0
  %v431 = vpop.trf.xlu0
  %v432 = vpop.trf.xlu0
  %v433 = vpop.trf.xlu0
  %v434 = vpop.trf.xlu0
  %v435 = vpop.trf.xlu0
  %v436 = vpop.trf.xlu0
  %v437 = vpop.trf.xlu0
  %v438 = vpop.trf.xlu0
  %v439 = vpop.trf.xlu0
  %v440 = vpop.trf.xlu0
  %v441 = vpop.trf.xlu0
  %v442 = vpop.trf.xlu0
  %v443 = vpop.trf.xlu0
  %v444 = vlaneseq
  %v445 = vshrl.u32 %v444, 7
  %v446 = vsub.s32 0, %v445
  %v447 = vrot.slane %v13, %v446
  %v448 = vrot.slane %v11, 4
  %v450 = vsel %vm19, %v428, 0
  %v452 = vsel %vm23, %v448, 0
  %454 = vmatprep.subr.mxu0 0.0
  %455 = vmatpush1.msra.mxu0 %v452
  %456 = vmatprep.subr.mxu0 0.0
  %457 = vmatpush1.msra.mxu0 0.0
  %458 = vmatprep.subr.mxu0 0.0
  %459 = vmatpush1.msra.mxu0 0.0
  %460 = vmatprep.subr.mxu0 0.0
  %461 = vmatpush1.msra.mxu0 0.0
  %462 = vmatprep.subr.mxu0 0.0
  %463 = vmatpush1.msra.mxu0 0.0
  %464 = vmatprep.subr.mxu0 0.0
  %465 = vmatpush1.msra.mxu0 0.0
  %466 = vmatprep.subr.mxu0 0.0
  %467 = vmatpush1.msra.mxu0 0.0
  %468 = vmatprep.subr.mxu0 0.0
  %469 = vmatpush1.msra.mxu0 0.0
  %470 = vmatprep.subr.mxu0 0.0
  %471 = vmatpush1.msra.mxu0 0.0
  %472 = vmatprep.subr.mxu0 0.0
  %473 = vmatpush1.msra.mxu0 0.0
  %474 = vmatprep.subr.mxu0 0.0
  %475 = vmatpush1.msra.mxu0 0.0
  %476 = vmatprep.subr.mxu0 0.0
  %477 = vmatpush1.msra.mxu0 0.0
  %478 = vmatprep.subr.mxu0 0.0
  %479 = vmatpush1.msra.mxu0 0.0
  %480 = vmatprep.subr.mxu0 0.0
  %481 = vmatpush1.msra.mxu0 0.0
  %482 = vmatprep.subr.mxu0 0.0
  %483 = vmatpush1.msra.mxu0 0.0
  %484 = vmatprep.subr.mxu0 0.0
  %485 = vmatpush1.msra.mxu0 0.0
  %486 = vmatprep.subr.mxu0 0.0
  %487 = vmatpush1.msra.mxu0 0.0
  %488 = vmatprep.subr.mxu0 0.0
  %489 = vmatpush1.msra.mxu0 0.0
  %490 = vmatprep.subr.mxu0 0.0
  %491 = vmatpush1.msra.mxu0 0.0
  %492 = vmatprep.subr.mxu0 0.0
  %493 = vmatpush1.msra.mxu0 0.0
  %494 = vmatprep.subr.mxu0 0.0
  %495 = vmatpush1.msra.mxu0 0.0
  %496 = vmatprep.subr.mxu0 0.0
  %497 = vmatpush1.msra.mxu0 0.0
  %498 = vmatprep.subr.mxu0 0.0
  %499 = vmatpush1.msra.mxu0 0.0
  %500 = vmatprep.subr.mxu0 0.0
  %501 = vmatpush1.msra.mxu0 0.0
  %502 = vmatprep.subr.mxu0 0.0
  %503 = vmatpush1.msra.mxu0 0.0
  %504 = vmatprep.subr.mxu0 0.0
  %505 = vmatpush1.msra.mxu0 0.0
  %506 = vmatprep.subr.mxu0 0.0
  %507 = vmatpush1.msra.mxu0 0.0
  %508 = vmatprep.subr.mxu0 0.0
  %509 = vmatpush1.msra.mxu0 0.0
  %510 = vmatprep.subr.mxu0 0.0
  %511 = vmatpush1.msra.mxu0 0.0
  %512 = vmatprep.subr.mxu0 0.0
  %513 = vmatpush1.msra.mxu0 0.0
  %514 = vmatprep.subr.mxu0 0.0
  %515 = vmatpush1.msra.mxu0 0.0
  %516 = vmatprep.subr.mxu0 0.0
  %517 = vmatpush1.msra.mxu0 0.0
  %518 = vmatprep.mubr.f32.mxu0 0.0
  %519 = vmatmul.mubr.f32.gmra.mrb[0].mxu0 %v450
  %v520 = vpop.f32.mrb[0].mxu0
  %v521 = vadd.f32 %v447, %v520
  %v522 = vpop.f32.mrb[0].mxu0
  %523 = vdwg.mxu0
  %v524 = vadd.f32 %v14, %v521
  %v525 = vsel %vm19, %v524, 0.0
  %526 = vadd.xlane.f32.xlu0 %v525
  %v527 = vpop.xlane.xlu0 %526
  %v528 = vrcp.pop 4.0
  %v529 = vmul.f32 %v527, %v528
  %v530 = vsub.f32 %v524, %v529
  %v531 = vmul.f32 %v530, %v530
  %v532 = vsel %vm19, %v531, 0.0
  %533 = vadd.xlane.f32.xlu0 %v532
  %v534 = vpop.xlane.xlu0 %533
  %v535 = vmul.f32 %v534, %v528
  %v536 = vadd.f32 %v535, 1e-05
  %v537 = vrsqrt.pop %v536
  %v538 = vmul.f32 %v530, %v537
  %v539 = vlaneseq
  %v540 = vshrl.u32 %v539, 7
  %v541 = vsub.s32 3, %v540
  %v542 = vrot.slane %v13, %v541
  %v543 = vmul.f32 %v538, %v542
  %v544 = vlaneseq
  %v545 = vshrl.u32 %v544, 7
  %v546 = vsub.s32 4, %v545
  %v547 = vrot.slane %v13, %v546
  %v548 = vadd.f32 %v543, %v547
  %v549 = vlaneseq
  %v550 = vshrl.u32 %v549, 7
  %v551 = vsub.s32 1, %v550
  %v552 = vrot.slane %v13, %v551
  %v554 = vsel %vm19, %v548, 0
  %v557 = vsel %vm23, %v12, 0
  %559 = vmatprep.subr.mxu0 0.0
  %560 = vmatpush1.msra.mxu0 %v557
  %561 = vmatprep.subr.mxu0 0.0
  %562 = vmatpush1.msra.mxu0 0.0
  %563 = vmatprep.subr.mxu0 0.0
  %564 = vmatpush1.msra.mxu0 0.0
  %565 = vmatprep.subr.mxu0 0.0
  %566 = vmatpush1.msra.mxu0 0.0
  %567 = vmatprep.subr.mxu0 0.0
  %568 = vmatpush1.msra.mxu0 0.0
  %569 = vmatprep.subr.mxu0 0.0
  %570 = vmatpush1.msra.mxu0 0.0
  %571 = vmatprep.subr.mxu0 0.0
  %572 = vmatpush1.msra.mxu0 0.0
  %573 = vmatprep.subr.mxu0 0.0
  %574 = vmatpush1.msra.mxu0 0.0
  %575 = vmatprep.subr.mxu0 0.0
  %576 = vmatpush1.msra.mxu0 0.0
  %577 = vmatprep.subr.mxu0 0.0
  %578 = vmatpush1.msra.mxu0 0.0
  %579 = vmatprep.subr.mxu0 0.0
  %580 = vmatpush1.msra.mxu0 0.0
  %581 = vmatprep.subr.mxu0 0.0
  %582 = vmatpush1.msra.mxu0 0.0
  %583 = vmatprep.subr.mxu0 0.0
  %584 = vmatpush1.msra.mxu0 0.0
  %585 = vmatprep.subr.mxu0 0.0
  %586 = vmatpush1.msra.mxu0 0.0
  %587 = vmatprep.subr.mxu0 0.0
  %588 = vmatpush1.msra.mxu0 0.0
  %589 = vmatprep.subr.mxu0 0.0
  %590 = vmatpush1.msra.mxu0 0.0
  %591 = vmatprep.subr.mxu0 0.0
  %592 = vmatpush1.msra.mxu0 0.0
  %593 = vmatprep.subr.mxu0 0.0
  %594 = vmatpush1.msra.mxu0 0.0
  %595 = vmatprep.subr.mxu0 0.0
  %596 = vmatpush1.msra.mxu0 0.0
  %597 = vmatprep.subr.mxu0 0.0
  %598 = vmatpush1.msra.mxu0 0.0
  %599 = vmatprep.subr.mxu0 0.0
  %600 = vmatpush1.msra.mxu0 0.0
  %601 = vmatprep.subr.mxu0 0.0
  %602 = vmatpush1.msra.mxu0 0.0
  %603 = vmatprep.subr.mxu0 0.0
  %604 = vmatpush1.msra.mxu0 0.0
  %605 = vmatprep.subr.mxu0 0.0
  %606 = vmatpush1.msra.mxu0 0.0
  %607 = vmatprep.subr.mxu0 0.0
  %608 = vmatpush1.msra.mxu0 0.0
  %609 = vmatprep.subr.mxu0 0.0
  %610 = vmatpush1.msra.mxu0 0.0
  %611 = vmatprep.subr.mxu0 0.0
  %612 = vmatpush1.msra.mxu0 0.0
  %613 = vmatprep.subr.mxu0 0.0
  %614 = vmatpush1.msra.mxu0 0.0
  %615 = vmatprep.subr.mxu0 0.0
  %616 = vmatpush1.msra.mxu0 0.0
  %617 = vmatprep.subr.mxu0 0.0
  %618 = vmatpush1.msra.mxu0 0.0
  %619 = vmatprep.subr.mxu0 0.0
  %620 = vmatpush1.msra.mxu0 0.0
  %621 = vmatprep.subr.mxu0 0.0
  %622 = vmatpush1.msra.mxu0 0.0
  %623 = vmatprep.mubr.f32.mxu0 0.0
  %624 = vmatmul.mubr.f32.gmra.mrb[0].mxu0 %v554
  %v625 = vpop.f32.mrb[0].mxu0
  %v626 = vadd.f32 %v552, %v625
  %v627 = vpop.f32.mrb[0].mxu0
  %628 = vdwg.mxu0
  %v629 = vmul.f32 %v626, 0.5
  %v630 = vmul.f32 %v626, 0.70710677
  %v631 = verf.f32.pop %v630
  %v632 = vadd.f32 %v631, 1.0
  %v633 = vmul.f32 %v629, %v632
  %v634 = vlaneseq
  %v635 = vshrl.u32 %v634, 7
  %v636 = vsub.s32 2, %v635
  %v637 = vrot.slane %v13, %v636
  %v638 = vrot.slane %v12, 4
  %vm639 = vcmask 23552
  %v641 = vsel %vm639, %v633, 0
  %vm643 = vcmask 1042432
  %v644 = vsel %vm643, %v638, 0
  %646 = vmatprep.subr.mxu0 0.0
  %647 = vmatpush1.msra.mxu0 %v644
  %648 = vmatprep.subr.mxu0 0.0
  %649 = vmatpush1.msra.mxu0 0.0
  %650 = vmatprep.subr.mxu0 0.0
  %651 = vmatpush1.msra.mxu0 0.0
  %652 = vmatprep.subr.mxu0 0.0
  %653 = vmatpush1.msra.mxu0 0.0
  %654 = vmatprep.subr.mxu0 0.0
  %655 = vmatpush1.msra.mxu0 0.0
  %656 = vmatprep.subr.mxu0 0.0
  %657 = vmatpush1.msra.mxu0 0.0
  %658 = vmatprep.subr.mxu0 0.0
  %659 = vmatpush1.msra.mxu0 0.0
  %660 = vmatprep.subr.mxu0 0.0
  %661 = vmatpush1.msra.mxu0 0.0
  %662 = vmatprep.subr.mxu0 0.0
  %663 = vmatpush1.msra.mxu0 0.0
  %664 = vmatprep.subr.mxu0 0.0
  %665 = vmatpush1.msra.mxu0 0.0
  %666 = vmatprep.subr.mxu0 0.0
  %667 = vmatpush1.msra.mxu0 0.0
  %668 = vmatprep.subr.mxu0 0.0
  %669 = vmatpush1.msra.mxu0 0.0
  %670 = vmatprep.subr.mxu0 0.0
  %671 = vmatpush1.msra.mxu0 0.0
  %672 = vmatprep.subr.mxu0 0.0
  %673 = vmatpush1.msra.mxu0 0.0
  %674 = vmatprep.subr.mxu0 0.0
  %675 = vmatpush1.msra.mxu0 0.0
  %676 = vmatprep.subr.mxu0 0.0
  %677 = vmatpush1.msra.mxu0 0.0
  %678 = vmatprep.subr.mxu0 0.0
  %679 = vmatpush1.msra.mxu0 0.0
  %680 = vmatprep.subr.mxu0 0.0
  %681 = vmatpush1.msra.mxu0 0.0
  %682 = vmatprep.subr.mxu0 0.0
  %683 = vmatpush1.msra.mxu0 0.0
  %684 = vmatprep.subr.mxu0 0.0
  %685 = vmatpush1.msra.mxu0 0.0
  %686 = vmatprep.subr.mxu0 0.0
  %687 = vmatpush1.msra.mxu0 0.0
  %688 = vmatprep.subr.mxu0 0.0
  %689 = vmatpush1.msra.mxu0 0.0
  %690 = vmatprep.subr.mxu0 0.0
  %691 = vmatpush1.msra.mxu0 0.0
  %692 = vmatprep.subr.mxu0 0.0
  %693 = vmatpush1.msra.mxu0 0.0
  %694 = vmatprep.subr.mxu0 0.0
  %695 = vmatpush1.msra.mxu0 0.0
  %696 = vmatprep.subr.mxu0 0.0
  %697 = vmatpush1.msra.mxu0 0.0
  %698 = vmatprep.subr.mxu0 0.0
  %699 = vmatpush1.msra.mxu0 0.0
  %700 = vmatprep.subr.mxu0 0.0
  %701 = vmatpush1.msra.mxu0 0.0
  %702 = vmatprep.subr.mxu0 0.0
  %703 = vmatpush1.msra.mxu0 0.0
  %704 = vmatprep.subr.mxu0 0.0
  %705 = vmatpush1.msra.mxu0 0.0
  %706 = vmatprep.subr.mxu0 0.0
  %707 = vmatpush1.msra.mxu0 0.0
  %708 = vmatprep.subr.mxu0 0.0
  %709 = vmatpush1.msra.mxu0 0.0
  %710 = vmatprep.mubr.f32.mxu0 0.0
  %711 = vmatmul.mubr.f32.gmra.mrb[0].mxu0 %v641
  %v712 = vpop.f32.mrb[0].mxu0
  %v713 = vadd.f32 %v637, %v712
  %v714 = vpop.f32.mrb[0].mxu0
  %715 = vdwg.mxu0
  %v716 = vadd.f32 %v548, %v713
  %v717 = vsel %vm19, %v716, 0.0
  %718 = vadd.xlane.f32.xlu0 %v717
  %v719 = vpop.xlane.xlu0 %718
  %v720 = vmul.f32 %v719, %v528
  %v721 = vsub.f32 %v716, %v720
  %v722 = vmul.f32 %v721, %v721
  %v723 = vsel %vm19, %v722, 0.0
  %724 = vadd.xlane.f32.xlu0 %v723
  %v725 = vpop.xlane.xlu0 %724
  %v726 = vmul.f32 %v725, %v528
  %v727 = vadd.f32 %v726, 1e-05
  %v728 = vrsqrt.pop %v727
  %v729 = vmul.f32 %v721, %v728
  %v730 = vlaneseq
  %v731 = vshrl.u32 %v730, 7
  %v732 = vsub.s32 5, %v731
  %v733 = vrot.slane %v13, %v732
  %v734 = vmul.f32 %v729, %v733
  %v735 = vlaneseq
  %v736 = vshrl.u32 %v735, 7
  %v737 = vsub.s32 6, %v736
  %v738 = vrot.slane %v13, %v737
  %v739 = vadd.f32 %v734, %v738
  %740 = vst.msk [vmem:[%s2] sm:$0xff] %vm19, %v739
  %s741 = scalar_lea.vmem %s0, 8
  %v742 = vld [vmem:[%s741] sm:$0xff]
  %v744 = vsel %vm19, %v742, 0
  %746 = vmatprep.subr.mxu0 0.0
  %747 = vmatpush1.msra.mxu0 %v25
  %748 = vmatprep.subr.mxu0 0.0
  %749 = vmatpush1.msra.mxu0 0.0
  %750 = vmatprep.subr.mxu0 0.0
  %751 = vmatpush1.msra.mxu0 0.0
  %752 = vmatprep.subr.mxu0 0.0
  %753 = vmatpush1.msra.mxu0 0.0
  %754 = vmatprep.subr.mxu0 0.0
  %755 = vmatpush1.msra.mxu0 0.0
  %756 = vmatprep.subr.mxu0 0.0
  %757 = vmatpush1.msra.mxu0 0.0
  %758 = vmatprep.subr.mxu0 0.0
  %759 = vmatpush1.msra.mxu0 0.0
  %760 = vmatprep.subr.mxu0 0.0
  %761 = vmatpush1.msra.mxu0 0.0
  %762 = vmatprep.subr.mxu0 0.0
  %763 = vmatpush1.msra.mxu0 0.0
  %764 = vmatprep.subr.mxu0 0.0
  %765 = vmatpush1.msra.mxu0 0.0
  %766 = vmatprep.subr.mxu0 0.0
  %767 = vmatpush1.msra.mxu0 0.0
  %768 = vmatprep.subr.mxu0 0.0
  %769 = vmatpush1.msra.mxu0 0.0
  %770 = vmatprep.subr.mxu0 0.0
  %771 = vmatpush1.msra.mxu0 0.0
  %772 = vmatprep.subr.mxu0 0.0
  %773 = vmatpush1.msra.mxu0 0.0
  %774 = vmatprep.subr.mxu0 0.0
  %775 = vmatpush1.msra.mxu0 0.0
  %776 = vmatprep.subr.mxu0 0.0
  %777 = vmatpush1.msra.mxu0 0.0
  %778 = vmatprep.subr.mxu0 0.0
  %779 = vmatpush1.msra.mxu0 0.0
  %780 = vmatprep.subr.mxu0 0.0
  %781 = vmatpush1.msra.mxu0 0.0
  %782 = vmatprep.subr.mxu0 0.0
  %783 = vmatpush1.msra.mxu0 0.0
  %784 = vmatprep.subr.mxu0 0.0
  %785 = vmatpush1.msra.mxu0 0.0
  %786 = vmatprep.subr.mxu0 0.0
  %787 = vmatpush1.msra.mxu0 0.0
  %788 = vmatprep.subr.mxu0 0.0
  %789 = vmatpush1.msra.mxu0 0.0
  %790 = vmatprep.subr.mxu0 0.0
  %791 = vmatpush1.msra.mxu0 0.0
  %792 = vmatprep.subr.mxu0 0.0
  %793 = vmatpush1.msra.mxu0 0.0
  %794 = vmatprep.subr.mxu0 0.0
  %795 = vmatpush1.msra.mxu0 0.0
  %796 = vmatprep.subr.mxu0 0.0
  %797 = vmatpush1.msra.mxu0 0.0
  %798 = vmatprep.subr.mxu0 0.0
  %799 = vmatpush1.msra.mxu0 0.0
  %800 = vmatprep.subr.mxu0 0.0
  %801 = vmatpush1.msra.mxu0 0.0
  %802 = vmatprep.subr.mxu0 0.0
  %803 = vmatpush1.msra.mxu0 0.0
  %804 = vmatprep.subr.mxu0 0.0
  %805 = vmatpush1.msra.mxu0 0.0
  %806 = vmatprep.subr.mxu0 0.0
  %807 = vmatpush1.msra.mxu0 0.0
  %808 = vmatprep.subr.mxu0 0.0
  %809 = vmatpush1.msra.mxu0 0.0
  %810 = vmatprep.mubr.f32.mxu0 0.0
  %811 = vmatmul.mubr.f32.gmra.mrb[0].mxu0 %v744
  %v812 = vpop.f32.mrb[0].mxu0
  %v813 = vadd.f32 %v18, %v812
  %v814 = vpop.f32.mrb[0].mxu0
  %815 = vdwg.mxu0
  %816 = vxpose.xlu0.b32.start [1/16] %v813, 128
  %817 = vxpose.xlu0.b32.cont [2/16] 0.0, 128
  %818 = vxpose.xlu0.b32.cont [3/16] 0.0, 128
  %819 = vxpose.xlu0.b32.cont [4/16] 0.0, 128
  %820 = vxpose.xlu0.b32.cont [5/16] 0.0, 128
  %821 = vxpose.xlu0.b32.cont [6/16] 0.0, 128
  %822 = vxpose.xlu0.b32.cont [7/16] 0.0, 128
  %823 = vxpose.xlu0.b32.cont [8/16] 0.0, 128
  %824 = vxpose.xlu0.b32.cont [9/16] 0.0, 128
  %825 = vxpose.xlu0.b32.cont [10/16] 0.0, 128
  %826 = vxpose.xlu0.b32.cont [11/16] 0.0, 128
  %827 = vxpose.xlu0.b32.cont [12/16] 0.0, 128
  %828 = vxpose.xlu0.b32.cont [13/16] 0.0, 128
  %829 = vxpose.xlu0.b32.cont [14/16] 0.0, 128
  %830 = vxpose.xlu0.b32.cont [15/16] 0.0, 128
  %831 = vxpose.xlu0.b32.end [16/16] 0.0, 128
  %v832 = vpop.trf.xlu0
  %v833 = vpop.trf.xlu0
  %v834 = vpop.trf.xlu0
  %v835 = vpop.trf.xlu0
  %v836 = vpop.trf.xlu0
  %v837 = vpop.trf.xlu0
  %v838 = vpop.trf.xlu0
  %v839 = vpop.trf.xlu0
  %v840 = vpop.trf.xlu0
  %v841 = vpop.trf.xlu0
  %v842 = vpop.trf.xlu0
  %v843 = vpop.trf.xlu0
  %v844 = vpop.trf.xlu0
  %v845 = vpop.trf.xlu0
  %v846 = vpop.trf.xlu0
  %v847 = vpop.trf.xlu0
  %849 = vrot.lane.b32.xlu0 %v813, 124
  %v850 = vpop.permute.xlu0 %849
  %852 = vxpose.xlu0.b32.start [1/16] %v850, 128
  %853 = vxpose.xlu0.b32.cont [2/16] 0.0, 128
  %854 = vxpose.xlu0.b32.cont [3/16] 0.0, 128
  %855 = vxpose.xlu0.b32.cont [4/16] 0.0, 128
  %856 = vxpose.xlu0.b32.cont [5/16] 0.0, 128
  %857 = vxpose.xlu0.b32.cont [6/16] 0.0, 128
  %858 = vxpose.xlu0.b32.cont [7/16] 0.0, 128
  %859 = vxpose.xlu0.b32.cont [8/16] 0.0, 128
  %860 = vxpose.xlu0.b32.cont [9/16] 0.0, 128
  %861 = vxpose.xlu0.b32.cont [10/16] 0.0, 128
  %862 = vxpose.xlu0.b32.cont [11/16] 0.0, 128
  %863 = vxpose.xlu0.b32.cont [12/16] 0.0, 128
  %864 = vxpose.xlu0.b32.cont [13/16] 0.0, 128
  %865 = vxpose.xlu0.b32.cont [14/16] 0.0, 128
  %866 = vxpose.xlu0.b32.cont [15/16] 0.0, 128
  %867 = vxpose.xlu0.b32.end [16/16] 0.0, 128
  %v868 = vpop.trf.xlu0
  %v869 = vpop.trf.xlu0
  %v870 = vpop.trf.xlu0
  %v871 = vpop.trf.xlu0
  %v872 = vpop.trf.xlu0
  %v873 = vpop.trf.xlu0
  %v874 = vpop.trf.xlu0
  %v875 = vpop.trf.xlu0
  %v876 = vpop.trf.xlu0
  %v877 = vpop.trf.xlu0
  %v878 = vpop.trf.xlu0
  %v879 = vpop.trf.xlu0
  %v880 = vpop.trf.xlu0
  %v881 = vpop.trf.xlu0
  %v882 = vpop.trf.xlu0
  %v883 = vpop.trf.xlu0
  %884 = vrot.lane.b32.xlu0 %v813, 120
  %v885 = vpop.permute.xlu0 %884
  %887 = vxpose.xlu0.b32.start [1/16] %v885, 128
  %888 = vxpose.xlu0.b32.cont [2/16] 0.0, 128
  %889 = vxpose.xlu0.b32.cont [3/16] 0.0, 128
  %890 = vxpose.xlu0.b32.cont [4/16] 0.0, 128
  %891 = vxpose.xlu0.b32.cont [5/16] 0.0, 128
  %892 = vxpose.xlu0.b32.cont [6/16] 0.0, 128
  %893 = vxpose.xlu0.b32.cont [7/16] 0.0, 128
  %894 = vxpose.xlu0.b32.cont [8/16] 0.0, 128
  %895 = vxpose.xlu0.b32.cont [9/16] 0.0, 128
  %896 = vxpose.xlu0.b32.cont [10/16] 0.0, 128
  %897 = vxpose.xlu0.b32.cont [11/16] 0.0, 128
  %898 = vxpose.xlu0.b32.cont [12/16] 0.0, 128
  %899 = vxpose.xlu0.b32.cont [13/16] 0.0, 128
  %900 = vxpose.xlu0.b32.cont [14/16] 0.0, 128
  %901 = vxpose.xlu0.b32.cont [15/16] 0.0, 128
  %902 = vxpose.xlu0.b32.end [16/16] 0.0, 128
  %v903 = vpop.trf.xlu0
  %v904 = vpop.trf.xlu0
  %v905 = vpop.trf.xlu0
  %v906 = vpop.trf.xlu0
  %v907 = vpop.trf.xlu0
  %v908 = vpop.trf.xlu0
  %v909 = vpop.trf.xlu0
  %v910 = vpop.trf.xlu0
  %v911 = vpop.trf.xlu0
  %v912 = vpop.trf.xlu0
  %v913 = vpop.trf.xlu0
  %v914 = vpop.trf.xlu0
  %v915 = vpop.trf.xlu0
  %v916 = vpop.trf.xlu0
  %v917 = vpop.trf.xlu0
  %v918 = vpop.trf.xlu0
  %v919 = vlaneseq
  %v920 = vshrl.u32 %v919, 7
  %v921 = vsub.s32 0, %v920
  %v922 = vrot.slane %v832, %v921
  %924 = vbcast.lane.b32.xlu0 %v922, 256
  %v925 = vpop.permute.xlu0 %924
  %v926 = vlaneseq
  %v927 = vshrl.u32 %v926, 7
  %v928 = vsub.s32 1, %v927
  %v929 = vrot.slane %v832, %v928
  %931 = vbcast.lane.b32.xlu0 %v929, 256
  %v932 = vpop.permute.xlu0 %931
  %v933 = vlaneseq
  %v934 = vshrl.u32 %v933, 7
  %v935 = vsub.s32 2, %v934
  %v936 = vrot.slane %v832, %v935
  %938 = vbcast.lane.b32.xlu0 %v936, 256
  %v939 = vpop.permute.xlu0 %938
  %v940 = vlaneseq
  %v941 = vshrl.u32 %v940, 7
  %v942 = vsub.s32 3, %v941
  %v943 = vrot.slane %v832, %v942
  %945 = vbcast.lane.b32.xlu0 %v943, 256
  %v946 = vpop.permute.xlu0 %945
  %v949 = vunpack.c.l.s4 1966171168
  %v950 = vunpack.c.0.s8 %v949
  %v951 = vlaneseq
  %v952 = vshrl.u32 %v951, 7
  %v953 = vsub.s32 %v950, %v952
  %v954 = vrot.slane %v868, %v953
  %v955 = vcombine.high %v954, %v954
  %v957 = vunpack.c.l.s4 1966171168
  %v958 = vunpack.c.0.s8 %v957
  %v959 = vlaneseq
  %v960 = vshrl.u32 %v959, 7
  %v961 = vsub.s32 %v958, %v960
  %v962 = vrot.slane %v954, %v961
  %v964 = vunpack.c.l.s4 1966171168
  %v965 = vunpack.c.0.s8 %v964
  %v966 = vlaneseq
  %v967 = vshrl.u32 %v966, 7
  %v968 = vsub.s32 %v965, %v967
  %v969 = vrot.slane %v955, %v968
  %v970 = vcombine.high %v962, %v962
  %v971 = vcombine.high %v969, %v969
  %v972 = vlaneseq
  %v973 = vshrl.u32 %v972, 7
  %v974 = vsub.s32 0, %v973
  %v975 = vrot.slane %v962, %v974
  %v976 = vlaneseq
  %v977 = vshrl.u32 %v976, 7
  %v978 = vsub.s32 0, %v977
  %v979 = vrot.slane %v969, %v978
  %v980 = vlaneseq
  %v981 = vshrl.u32 %v980, 7
  %v982 = vsub.s32 0, %v981
  %v983 = vrot.slane %v970, %v982
  %v984 = vlaneseq
  %v985 = vshrl.u32 %v984, 7
  %v986 = vsub.s32 0, %v985
  %v987 = vrot.slane %v971, %v986
  %v992 = vmul.f32 %v925, %v975
  %v993 = vmul.f32 %v932, %v979
  %v994 = vmul.f32 %v939, %v983
  %v995 = vmul.f32 %v946, %v987
  %v996 = vsel %vm277, %v992, -inf
  %997 = vmax.xlane.f32.xlu0 %v996
  %v998 = vpop.xlane.xlu0 %997
  %v999 = vsel %vm277, %v993, -inf
  %1000 = vmax.xlane.f32.xlu0 %v999
  %v1001 = vpop.xlane.xlu0 %1000
  %v1002 = vsel %vm277, %v994, -inf
  %1003 = vmax.xlane.f32.xlu0 %v1002
  %v1004 = vpop.xlane.xlu0 %1003
  %v1005 = vsel %vm277, %v995, -inf
  %1006 = vmax.xlane.f32.xlu0 %v1005
  %v1007 = vpop.xlane.xlu0 %1006
  %v1008 = vsub.f32 %v992, %v998
  %v1009 = vsub.f32 %v993, %v1001
  %v1010 = vsub.f32 %v994, %v1004
  %v1011 = vsub.f32 %v995, %v1007
  %v1012 = vmul.f32 %v1008, 1.442695
  %v1013 = vpow.pop %v1012
  %v1014 = vmul.f32 %v1009, 1.442695
  %v1015 = vpow.pop %v1014
  %v1016 = vmul.f32 %v1010, 1.442695
  %v1017 = vpow.pop %v1016
  %v1018 = vmul.f32 %v1011, 1.442695
  %v1019 = vpow.pop %v1018
  %v1020 = vsel %vm277, %v1013, 0.0
  %1021 = vadd.xlane.f32.xlu0 %v1020
  %v1022 = vpop.xlane.xlu0 %1021
  %v1023 = vsel %vm277, %v1015, 0.0
  %1024 = vadd.xlane.f32.xlu0 %v1023
  %v1025 = vpop.xlane.xlu0 %1024
  %v1026 = vsel %vm277, %v1017, 0.0
  %1027 = vadd.xlane.f32.xlu0 %v1026
  %v1028 = vpop.xlane.xlu0 %1027
  %v1029 = vsel %vm277, %v1019, 0.0
  %1030 = vadd.xlane.f32.xlu0 %v1029
  %v1031 = vpop.xlane.xlu0 %1030
  %v1032 = vrcp.pop %v1022
  %v1033 = vmul.f32 %v1013, %v1032
  %v1034 = vrcp.pop %v1025
  %v1035 = vmul.f32 %v1015, %v1034
  %v1036 = vrcp.pop %v1028
  %v1037 = vmul.f32 %v1017, %v1036
  %v1038 = vrcp.pop %v1031
  %v1039 = vmul.f32 %v1019, %v1038
  %v1042 = vunpack.c.l.s4 1966171168
  %v1043 = vunpack.c.0.s8 %v1042
  %v1044 = vlaneseq
  %v1045 = vshrl.u32 %v1044, 7
  %v1046 = vsub.s32 %v1043, %v1045
  %v1047 = vrot.slane %v903, %v1046
  %v1048 = vcombine.high %v1047, %v1047
  %v1050 = vunpack.c.l.s4 1966171168
  %v1051 = vunpack.c.0.s8 %v1050
  %v1052 = vlaneseq
  %v1053 = vshrl.u32 %v1052, 7
  %v1054 = vsub.s32 %v1051, %v1053
  %v1055 = vrot.slane %v1047, %v1054
  %v1057 = vunpack.c.l.s4 1966171168
  %v1058 = vunpack.c.0.s8 %v1057
  %v1059 = vlaneseq
  %v1060 = vshrl.u32 %v1059, 7
  %v1061 = vsub.s32 %v1058, %v1060
  %v1062 = vrot.slane %v1048, %v1061
  %v1063 = vcombine.high %v1055, %v1055
  %v1064 = vcombine.high %v1062, %v1062
  %v1065 = vlaneseq
  %v1066 = vshrl.u32 %v1065, 7
  %v1067 = vsub.s32 0, %v1066
  %v1068 = vrot.slane %v1055, %v1067
  %v1069 = vlaneseq
  %v1070 = vshrl.u32 %v1069, 7
  %v1071 = vsub.s32 0, %v1070
  %v1072 = vrot.slane %v1062, %v1071
  %v1073 = vlaneseq
  %v1074 = vshrl.u32 %v1073, 7
  %v1075 = vsub.s32 0, %v1074
  %v1076 = vrot.slane %v1063, %v1075
  %v1077 = vlaneseq
  %v1078 = vshrl.u32 %v1077, 7
  %v1079 = vsub.s32 0, %v1078
  %v1080 = vrot.slane %v1064, %v1079
  %v1085 = vmul.f32 %v1033, %v1068
  %v1086 = vmul.f32 %v1035, %v1072
  %v1087 = vmul.f32 %v1037, %v1076
  %v1088 = vmul.f32 %v1039, %v1080
  %v1089 = vsel %vm277, %v1085, 0.0
  %1090 = vadd.xlane.f32.xlu0 %v1089
  %v1091 = vpop.xlane.xlu0 %1090
  %v1092 = vsel %vm277, %v1086, 0.0
  %1093 = vadd.xlane.f32.xlu0 %v1092
  %v1094 = vpop.xlane.xlu0 %1093
  %v1095 = vsel %vm277, %v1087, 0.0
  %1096 = vadd.xlane.f32.xlu0 %v1095
  %v1097 = vpop.xlane.xlu0 %1096
  %v1098 = vsel %vm277, %v1088, 0.0
  %1099 = vadd.xlane.f32.xlu0 %v1098
  %v1100 = vpop.xlane.xlu0 %1099
  %v1105 = vlaneseq
  %v1106 = vshrl.u32 %v1105, 7
  %v1107 = vsub.s32 %v388, %v1106
  %v1108 = vrot.slane %v1091, %v1107
  %v1109 = vlaneseq
  %v1110 = vshrl.u32 %v1109, 7
  %v1111 = vsub.s32 %v388, %v1110
  %v1112 = vrot.slane %v1094, %v1111
  %v1113 = vlaneseq
  %v1114 = vshrl.u32 %v1113, 7
  %v1115 = vsub.s32 %v388, %v1114
  %v1116 = vrot.slane %v1097, %v1115
  %v1117 = vlaneseq
  %v1118 = vshrl.u32 %v1117, 7
  %v1119 = vsub.s32 %v388, %v1118
  %v1120 = vrot.slane %v1100, %v1119
  %v1121 = vsel %vm405, %v1112, %v1108
  %v1122 = vsel %vm407, %v1116, %v1121
  %v1123 = vsel %vm409, %v1120, %v1122
  %1125 = vxpose.xlu0.b32.start [1/16] %v1123, 128
  %1126 = vxpose.xlu0.b32.cont [2/16] 0.0, 128
  %1127 = vxpose.xlu0.b32.cont [3/16] 0.0, 128
  %1128 = vxpose.xlu0.b32.cont [4/16] 0.0, 128
  %1129 = vxpose.xlu0.b32.cont [5/16] 0.0, 128
  %1130 = vxpose.xlu0.b32.cont [6/16] 0.0, 128
  %1131 = vxpose.xlu0.b32.cont [7/16] 0.0, 128
  %1132 = vxpose.xlu0.b32.cont [8/16] 0.0, 128
  %1133 = vxpose.xlu0.b32.cont [9/16] 0.0, 128
  %1134 = vxpose.xlu0.b32.cont [10/16] 0.0, 128
  %1135 = vxpose.xlu0.b32.cont [11/16] 0.0, 128
  %1136 = vxpose.xlu0.b32.cont [12/16] 0.0, 128
  %1137 = vxpose.xlu0.b32.cont [13/16] 0.0, 128
  %1138 = vxpose.xlu0.b32.cont [14/16] 0.0, 128
  %1139 = vxpose.xlu0.b32.cont [15/16] 0.0, 128
  %1140 = vxpose.xlu0.b32.end [16/16] 0.0, 128
  %v1141 = vpop.trf.xlu0
  %v1142 = vpop.trf.xlu0
  %v1143 = vpop.trf.xlu0
  %v1144 = vpop.trf.xlu0
  %v1145 = vpop.trf.xlu0
  %v1146 = vpop.trf.xlu0
  %v1147 = vpop.trf.xlu0
  %v1148 = vpop.trf.xlu0
  %v1149 = vpop.trf.xlu0
  %v1150 = vpop.trf.xlu0
  %v1151 = vpop.trf.xlu0
  %v1152 = vpop.trf.xlu0
  %v1153 = vpop.trf.xlu0
  %v1154 = vpop.trf.xlu0
  %v1155 = vpop.trf.xlu0
  %v1156 = vpop.trf.xlu0
  %v1158 = vsel %vm19, %v1141, 0
  %1160 = vmatprep.subr.mxu0 0.0
  %1161 = vmatpush1.msra.mxu0 %v452
  %1162 = vmatprep.subr.mxu0 0.0
  %1163 = vmatpush1.msra.mxu0 0.0
  %1164 = vmatprep.subr.mxu0 0.0
  %1165 = vmatpush1.msra.mxu0 0.0
  %1166 = vmatprep.subr.mxu0 0.0
  %1167 = vmatpush1.msra.mxu0 0.0
  %1168 = vmatprep.subr.mxu0 0.0
  %1169 = vmatpush1.msra.mxu0 0.0
  %1170 = vmatprep.subr.mxu0 0.0
  %1171 = vmatpush1.msra.mxu0 0.0
  %1172 = vmatprep.subr.mxu0 0.0
  %1173 = vmatpush1.msra.mxu0 0.0
  %1174 = vmatprep.subr.mxu0 0.0
  %1175 = vmatpush1.msra.mxu0 0.0
  %1176 = vmatprep.subr.mxu0 0.0
  %1177 = vmatpush1.msra.mxu0 0.0
  %1178 = vmatprep.subr.mxu0 0.0
  %1179 = vmatpush1.msra.mxu0 0.0
  %1180 = vmatprep.subr.mxu0 0.0
  %1181 = vmatpush1.msra.mxu0 0.0
  %1182 = vmatprep.subr.mxu0 0.0
  %1183 = vmatpush1.msra.mxu0 0.0
  %1184 = vmatprep.subr.mxu0 0.0
  %1185 = vmatpush1.msra.mxu0 0.0
  %1186 = vmatprep.subr.mxu0 0.0
  %1187 = vmatpush1.msra.mxu0 0.0
  %1188 = vmatprep.subr.mxu0 0.0
  %1189 = vmatpush1.msra.mxu0 0.0
  %1190 = vmatprep.subr.mxu0 0.0
  %1191 = vmatpush1.msra.mxu0 0.0
  %1192 = vmatprep.subr.mxu0 0.0
  %1193 = vmatpush1.msra.mxu0 0.0
  %1194 = vmatprep.subr.mxu0 0.0
  %1195 = vmatpush1.msra.mxu0 0.0
  %1196 = vmatprep.subr.mxu0 0.0
  %1197 = vmatpush1.msra.mxu0 0.0
  %1198 = vmatprep.subr.mxu0 0.0
  %1199 = vmatpush1.msra.mxu0 0.0
  %1200 = vmatprep.subr.mxu0 0.0
  %1201 = vmatpush1.msra.mxu0 0.0
  %1202 = vmatprep.subr.mxu0 0.0
  %1203 = vmatpush1.msra.mxu0 0.0
  %1204 = vmatprep.subr.mxu0 0.0
  %1205 = vmatpush1.msra.mxu0 0.0
  %1206 = vmatprep.subr.mxu0 0.0
  %1207 = vmatpush1.msra.mxu0 0.0
  %1208 = vmatprep.subr.mxu0 0.0
  %1209 = vmatpush1.msra.mxu0 0.0
  %1210 = vmatprep.subr.mxu0 0.0
  %1211 = vmatpush1.msra.mxu0 0.0
  %1212 = vmatprep.subr.mxu0 0.0
  %1213 = vmatpush1.msra.mxu0 0.0
  %1214 = vmatprep.subr.mxu0 0.0
  %1215 = vmatpush1.msra.mxu0 0.0
  %1216 = vmatprep.subr.mxu0 0.0
  %1217 = vmatpush1.msra.mxu0 0.0
  %1218 = vmatprep.subr.mxu0 0.0
  %1219 = vmatpush1.msra.mxu0 0.0
  %1220 = vmatprep.subr.mxu0 0.0
  %1221 = vmatpush1.msra.mxu0 0.0
  %1222 = vmatprep.subr.mxu0 0.0
  %1223 = vmatpush1.msra.mxu0 0.0
  %1224 = vmatprep.mubr.f32.mxu0 0.0
  %1225 = vmatmul.mubr.f32.gmra.mrb[0].mxu0 %v1158
  %v1226 = vpop.f32.mrb[0].mxu0
  %v1227 = vadd.f32 %v447, %v1226
  %v1228 = vpop.f32.mrb[0].mxu0
  %1229 = vdwg.mxu0
  %v1230 = vadd.f32 %v742, %v1227
  %v1231 = vsel %vm19, %v1230, 0.0
  %1232 = vadd.xlane.f32.xlu0 %v1231
  %v1233 = vpop.xlane.xlu0 %1232
  %v1234 = vmul.f32 %v1233, %v528
  %v1235 = vsub.f32 %v1230, %v1234
  %v1236 = vmul.f32 %v1235, %v1235
  %v1237 = vsel %vm19, %v1236, 0.0
  %1238 = vadd.xlane.f32.xlu0 %v1237
  %v1239 = vpop.xlane.xlu0 %1238
  %v1240 = vmul.f32 %v1239, %v528
  %v1241 = vadd.f32 %v1240, 1e-05
  %v1242 = vrsqrt.pop %v1241
  %v1243 = vmul.f32 %v1235, %v1242
  %v1244 = vmul.f32 %v1243, %v542
  %v1245 = vadd.f32 %v1244, %v547
  %v1247 = vsel %vm19, %v1245, 0
  %1249 = vmatprep.subr.mxu0 0.0
  %1250 = vmatpush1.msra.mxu0 %v557
  %1251 = vmatprep.subr.mxu0 0.0
  %1252 = vmatpush1.msra.mxu0 0.0
  %1253 = vmatprep.subr.mxu0 0.0
  %1254 = vmatpush1.msra.mxu0 0.0
  %1255 = vmatprep.subr.mxu0 0.0
  %1256 = vmatpush1.msra.mxu0 0.0
  %1257 = vmatprep.subr.mxu0 0.0
  %1258 = vmatpush1.msra.mxu0 0.0
  %1259 = vmatprep.subr.mxu0 0.0
  %1260 = vmatpush1.msra.mxu0 0.0
  %1261 = vmatprep.subr.mxu0 0.0
  %1262 = vmatpush1.msra.mxu0 0.0
  %1263 = vmatprep.subr.mxu0 0.0
  %1264 = vmatpush1.msra.mxu0 0.0
  %1265 = vmatprep.subr.mxu0 0.0
  %1266 = vmatpush1.msra.mxu0 0.0
  %1267 = vmatprep.subr.mxu0 0.0
  %1268 = vmatpush1.msra.mxu0 0.0
  %1269 = vmatprep.subr.mxu0 0.0
  %1270 = vmatpush1.msra.mxu0 0.0
  %1271 = vmatprep.subr.mxu0 0.0
  %1272 = vmatpush1.msra.mxu0 0.0
  %1273 = vmatprep.subr.mxu0 0.0
  %1274 = vmatpush1.msra.mxu0 0.0
  %1275 = vmatprep.subr.mxu0 0.0
  %1276 = vmatpush1.msra.mxu0 0.0
  %1277 = vmatprep.subr.mxu0 0.0
  %1278 = vmatpush1.msra.mxu0 0.0
  %1279 = vmatprep.subr.mxu0 0.0
  %1280 = vmatpush1.msra.mxu0 0.0
  %1281 = vmatprep.subr.mxu0 0.0
  %1282 = vmatpush1.msra.mxu0 0.0
  %1283 = vmatprep.subr.mxu0 0.0
  %1284 = vmatpush1.msra.mxu0 0.0
  %1285 = vmatprep.subr.mxu0 0.0
  %1286 = vmatpush1.msra.mxu0 0.0
  %1287 = vmatprep.subr.mxu0 0.0
  %1288 = vmatpush1.msra.mxu0 0.0
  %1289 = vmatprep.subr.mxu0 0.0
  %1290 = vmatpush1.msra.mxu0 0.0
  %1291 = vmatprep.subr.mxu0 0.0
  %1292 = vmatpush1.msra.mxu0 0.0
  %1293 = vmatprep.subr.mxu0 0.0
  %1294 = vmatpush1.msra.mxu0 0.0
  %1295 = vmatprep.subr.mxu0 0.0
  %1296 = vmatpush1.msra.mxu0 0.0
  %1297 = vmatprep.subr.mxu0 0.0
  %1298 = vmatpush1.msra.mxu0 0.0
  %1299 = vmatprep.subr.mxu0 0.0
  %1300 = vmatpush1.msra.mxu0 0.0
  %1301 = vmatprep.subr.mxu0 0.0
  %1302 = vmatpush1.msra.mxu0 0.0
  %1303 = vmatprep.subr.mxu0 0.0
  %1304 = vmatpush1.msra.mxu0 0.0
  %1305 = vmatprep.subr.mxu0 0.0
  %1306 = vmatpush1.msra.mxu0 0.0
  %1307 = vmatprep.subr.mxu0 0.0
  %1308 = vmatpush1.msra.mxu0 0.0
  %1309 = vmatprep.subr.mxu0 0.0
  %1310 = vmatpush1.msra.mxu0 0.0
  %1311 = vmatprep.subr.mxu0 0.0
  %1312 = vmatpush1.msra.mxu0 0.0
  %1313 = vmatprep.mubr.f32.mxu0 0.0
  %1314 = vmatmul.mubr.f32.gmra.mrb[0].mxu0 %v1247
  %v1315 = vpop.f32.mrb[0].mxu0
  %v1316 = vadd.f32 %v552, %v1315
  %v1317 = vpop.f32.mrb[0].mxu0
  %1318 = vdwg.mxu0
  %v1319 = vmul.f32 %v1316, 0.5
  %v1320 = vmul.f32 %v1316, 0.70710677
  %v1321 = verf.f32.pop %v1320
  %v1322 = vadd.f32 %v1321, 1.0
  %v1323 = vmul.f32 %v1319, %v1322
  %v1325 = vsel %vm639, %v1323, 0
  %1327 = vmatprep.subr.mxu0 0.0
  %1328 = vmatpush1.msra.mxu0 %v644
  %1329 = vmatprep.subr.mxu0 0.0
  %1330 = vmatpush1.msra.mxu0 0.0
  %1331 = vmatprep.subr.mxu0 0.0
  %1332 = vmatpush1.msra.mxu0 0.0
  %1333 = vmatprep.subr.mxu0 0.0
  %1334 = vmatpush1.msra.mxu0 0.0
  %1335 = vmatprep.subr.mxu0 0.0
  %1336 = vmatpush1.msra.mxu0 0.0
  %1337 = vmatprep.subr.mxu0 0.0
  %1338 = vmatpush1.msra.mxu0 0.0
  %1339 = vmatprep.subr.mxu0 0.0
  %1340 = vmatpush1.msra.mxu0 0.0
  %1341 = vmatprep.subr.mxu0 0.0
  %1342 = vmatpush1.msra.mxu0 0.0
  %1343 = vmatprep.subr.mxu0 0.0
  %1344 = vmatpush1.msra.mxu0 0.0
  %1345 = vmatprep.subr.mxu0 0.0
  %1346 = vmatpush1.msra.mxu0 0.0
  %1347 = vmatprep.subr.mxu0 0.0
  %1348 = vmatpush1.msra.mxu0 0.0
  %1349 = vmatprep.subr.mxu0 0.0
  %1350 = vmatpush1.msra.mxu0 0.0
  %1351 = vmatprep.subr.mxu0 0.0
  %1352 = vmatpush1.msra.mxu0 0.0
  %1353 = vmatprep.subr.mxu0 0.0
  %1354 = vmatpush1.msra.mxu0 0.0
  %1355 = vmatprep.subr.mxu0 0.0
  %1356 = vmatpush1.msra.mxu0 0.0
  %1357 = vmatprep.subr.mxu0 0.0
  %1358 = vmatpush1.msra.mxu0 0.0
  %1359 = vmatprep.subr.mxu0 0.0
  %1360 = vmatpush1.msra.mxu0 0.0
  %1361 = vmatprep.subr.mxu0 0.0
  %1362 = vmatpush1.msra.mxu0 0.0
  %1363 = vmatprep.subr.mxu0 0.0
  %1364 = vmatpush1.msra.mxu0 0.0
  %1365 = vmatprep.subr.mxu0 0.0
  %1366 = vmatpush1.msra.mxu0 0.0
  %1367 = vmatprep.subr.mxu0 0.0
  %1368 = vmatpush1.msra.mxu0 0.0
  %1369 = vmatprep.subr.mxu0 0.0
  %1370 = vmatpush1.msra.mxu0 0.0
  %1371 = vmatprep.subr.mxu0 0.0
  %1372 = vmatpush1.msra.mxu0 0.0
  %1373 = vmatprep.subr.mxu0 0.0
  %1374 = vmatpush1.msra.mxu0 0.0
  %1375 = vmatprep.subr.mxu0 0.0
  %1376 = vmatpush1.msra.mxu0 0.0
  %1377 = vmatprep.subr.mxu0 0.0
  %1378 = vmatpush1.msra.mxu0 0.0
  %1379 = vmatprep.subr.mxu0 0.0
  %1380 = vmatpush1.msra.mxu0 0.0
  %1381 = vmatprep.subr.mxu0 0.0
  %1382 = vmatpush1.msra.mxu0 0.0
  %1383 = vmatprep.subr.mxu0 0.0
  %1384 = vmatpush1.msra.mxu0 0.0
  %1385 = vmatprep.subr.mxu0 0.0
  %1386 = vmatpush1.msra.mxu0 0.0
  %1387 = vmatprep.subr.mxu0 0.0
  %1388 = vmatpush1.msra.mxu0 0.0
  %1389 = vmatprep.subr.mxu0 0.0
  %1390 = vmatpush1.msra.mxu0 0.0
  %1391 = vmatprep.mubr.f32.mxu0 0.0
  %1392 = vmatmul.mubr.f32.gmra.mrb[0].mxu0 %v1325
  %v1393 = vpop.f32.mrb[0].mxu0
  %v1394 = vadd.f32 %v637, %v1393
  %v1395 = vpop.f32.mrb[0].mxu0
  %1396 = vdwg.mxu0
  %v1397 = vadd.f32 %v1245, %v1394
  %v1398 = vsel %vm19, %v1397, 0.0
  %1399 = vadd.xlane.f32.xlu0 %v1398
  %v1400 = vpop.xlane.xlu0 %1399
  %v1401 = vmul.f32 %v1400, %v528
  %v1402 = vsub.f32 %v1397, %v1401
  %v1403 = vmul.f32 %v1402, %v1402
  %v1404 = vsel %vm19, %v1403, 0.0
  %1405 = vadd.xlane.f32.xlu0 %v1404
  %v1406 = vpop.xlane.xlu0 %1405
  %v1407 = vmul.f32 %v1406, %v528
  %v1408 = vadd.f32 %v1407, 1e-05
  %v1409 = vrsqrt.pop %v1408
  %v1410 = vmul.f32 %v1402, %v1409
  %v1411 = vmul.f32 %v1410, %v733
  %v1412 = vadd.f32 %v1411, %v738
  %s1413 = scalar_lea.vmem %s2, 8
  %1414 = vst.msk [vmem:[%s1413] sm:$0xff] %vm19, %v1412
  // Predicated region
  $region10: #{tpu_custom_call.1} parent=0 // pred_check
    _
  $region11: #{tpu_custom_call.1} parent=0 // pred_check_branch
    %1416 = sbr.rel (0) target = $region13
  $region12: #{tpu_custom_call.1} parent=0 // pred_region
    _
  $region13: #{tpu_custom_call.1} parent=0 // pred_fallthru
    _
  // Predicated region
  $region14: #{tpu_custom_call.1} parent=0 // pred_check
    _
  $region15: #{tpu_custom_call.1} parent=0 // pred_check_branch
    %1418 = sbr.rel (0) target = $region17
  $region16: #{tpu_custom_call.1} parent=0 // pred_region
    _
  $region17: #{tpu_custom_call.1} parent=0 // pred_fallthru
    _

</llo_original>
